<compile_context>
chip_gen: v5e
topology: v5e:2x2
jax: 0.10.0
libtpu: 0.0.40
codegen_flags: <defaults>
</compile_context>

<pallas_src>
import math
from functools import partial

import numpy as np
import jax
import jax.numpy as jnp
from jax import lax
from jax.experimental import pallas as pl
from jax.experimental.pallas import tpu as pltpu

# ---------------- synthesized PotentialDipole parameters / formulas ----------------
SMEARING = 1.0          # potential.smearing
LR_WAVELENGTH = 2.0     # calculator.lr_wavelength
PREFACTOR = 1.0
FULL_NEIGHBOR_LIST = False

SQRT_2_OVER_PI = math.sqrt(2.0 / math.pi)
_HIGHEST = jax.lax.Precision.HIGHEST


def _self_contribution(smearing):
    return (2.0 / 3.0) * SQRT_2_OVER_PI / smearing ** 3


# ------------------------------ fused Pallas kernel ---------------------------------
def _fused_dipole_kernel(inv_vol_ref, dip_ref, pos_ref, idx_ref, vec_ref, kv_ref,
                         out_ref, *, smearing, full_neighbor_list, prefactor):
    """Short-range pair part + k-space part + corrections, all lane-dense.

    inv_vol_ref : SMEM (1,)  f32   1 / |det(cell)|
    dip_ref     : VMEM (3,N) f32   dipoles^T
    pos_ref     : VMEM (3,N) f32   positions^T
    idx_ref     : VMEM (2,P) i32   neighbor_indices^T (padded pairs: index 0)
    vec_ref     : VMEM (3,P) f32   neighbor_vectors^T (padded pairs: zero vector)
    kv_ref      : VMEM (3,K) f32   kvectors^T
    out_ref     : VMEM (3,N) f32   prefactor * (pot_sr + pot_lr), transposed
    """
    f32 = jnp.float32
    dip = dip_ref[...]
    pos = pos_ref[...]
    idx = idx_ref[...]
    v = vec_ref[...]
    kv = kv_ref[...]
    n_atoms = dip.shape[1]

    # ---------------- short-range pair part ----------------
    r2 = jnp.sum(v * v, axis=0, keepdims=True)                       # (1, P)
    valid = r2 > 0.0                                                 # guards padded pairs
    inv_r = lax.rsqrt(jnp.where(valid, r2, 1.0))
    r = r2 * inv_r
    inv_r2 = inv_r * inv_r
    inv_r3 = inv_r2 * inv_r
    inv_r5 = inv_r3 * inv_r2

    # erfc (A&S 7.1.26) fused with the gaussian: exp(-x^2) evaluated once per pair.
    x = r * (1.0 / (math.sqrt(2.0) * smearing))
    g = jnp.exp((-0.5 / (smearing * smearing)) * r2)                 # exp(-x^2)
    t = pl.reciprocal(1.0 + 0.3275911 * x, approx=True)
    poly = t * (0.254829592 + t * (-0.284496736 + t * (1.421413741
               + t * (-1.453152027 + t * 1.061405429))))
    erfc_x = poly * g

    # T_SR(r) = B*I - C*(r ⊗ r)
    B = erfc_x * inv_r3 + (SQRT_2_OVER_PI / smearing) * g * inv_r2
    C = (3.0 * erfc_x * inv_r5
         + SQRT_2_OVER_PI * g * ((3.0 / smearing) * inv_r2 + 1.0 / smearing ** 3) * inv_r2)
    B = jnp.where(valid, B, 0.0)
    C = jnp.where(valid, C, 0.0)

    atom_i = idx[0:1, :]                                             # (1, P)
    atom_j = idx[1:2, :]
    if full_neighbor_list:
        gather_idx, scatter_idx = atom_j, atom_i
        v2, B2, C2 = v, B, C
    else:
        # Stack both directions of the half list -> 2 MXU matmuls instead of 4.
        gather_idx = jnp.concatenate([atom_j, atom_i], axis=1)       # (1, 2P)
        scatter_idx = jnp.concatenate([atom_i, atom_j], axis=1)
        v2 = jnp.concatenate([v, v], axis=1)
        B2 = jnp.concatenate([B, B], axis=1)
        C2 = jnp.concatenate([C, C], axis=1)
    n_cols = gather_idx.shape[1]

    rows = lax.broadcasted_iota(jnp.int32, (n_atoms, n_cols), 0)
    oh_gather = (rows == gather_idx).astype(f32)                     # (N, 2P)
    oh_scatter = (rows == scatter_idx).astype(f32)

    # gather dipoles of the source atoms: (3,N)@(N,2P) -> (3,2P)
    dip_g = lax.dot_general(dip, oh_gather, (((1,), (0,)), ((), ())),
                            precision=_HIGHEST, preferred_element_type=f32)
    vdotmu = jnp.sum(v2 * dip_g, axis=0, keepdims=True)              # (1, 2P)
    contrib = B2 * dip_g - (C2 * vdotmu) * v2                        # T(r) @ mu
    # index_add: contract the pair axis -> (3, N)
    pot_sr = lax.dot_general(contrib, oh_scatter, (((1,), (1,)), ((), ())),
                             precision=_HIGHEST, preferred_element_type=f32)
    pot_sr = pot_sr * 0.5

    # ---------------- k-space long-range part ----------------
    ksq = jnp.sum(kv * kv, axis=0, keepdims=True)                    # (1, K)
    valid_k = ksq > 0.0
    G = jnp.where(valid_k,
                  (4.0 * math.pi) * jnp.exp((-0.5 * smearing * smearing) * ksq)
                  / jnp.where(valid_k, ksq, 1.0),
                  0.0)                                               # lr_from_k_sq

    kxd = (((0,), (0,)), ((), ()))                                   # contract coord axis
    trig = lax.dot_general(pos, kv, kxd, precision=_HIGHEST,
                           preferred_element_type=f32)               # (N, K)
    c = jnp.cos(trig)
    s = jnp.sin(trig)
    mu_k = lax.dot_general(dip, kv, kxd, precision=_HIGHEST,
                           preferred_element_type=f32)               # (N, K)

    # reduce over atoms is on sublanes (cheap), lane axis stays K
    c_sumG = jnp.sum(c * mu_k, axis=0, keepdims=True) * G            # (1, K)
    s_sumG = jnp.sum(s * mu_k, axis=0, keepdims=True) * G
    w = c_sumG * c + s_sumG * s                                      # (N, K)
    energy = lax.dot_general(kv, w, (((1,), (1,)), ((), ())),
                             precision=_HIGHEST, preferred_element_type=f32)  # (3, N)

    # ---------------- corrections + combine (fused epilogue) ----------------
    inv_vol = inv_vol_ref[0]
    energy = energy * inv_vol
    energy = energy - dip * _self_contribution(smearing)
    dip_sum = jnp.sum(dip, axis=1, keepdims=True)                    # (3, 1)
    energy = energy + ((4.0 * math.pi / 3.0) * inv_vol) * dip_sum
    pot_lr = energy * 0.5

    out_ref[...] = prefactor * (pot_sr + pot_lr)


# --------------------------------- glue (host / numpy) -------------------------------
def _generate_kvectors_for_ewald_np(ns, cell):
    # torchpme.lib.generate_kvectors_for_ewald: full fftfreq integer grid (incl. k=0)
    # mapped through the reciprocal cell 2*pi*inv(cell).T (host-side, float64).
    freqs = [np.fft.fftfreq(int(n)) * int(n) for n in ns]
    nx, ny, nz = np.meshgrid(*freqs, indexing="ij")
    nvecs = np.stack([nx, ny, nz], axis=-1).reshape(-1, 3)
    reciprocal = 2.0 * np.pi * np.linalg.inv(np.asarray(cell, dtype=np.float64)).T
    return nvecs @ reciprocal                                        # (K, 3) float64


def calculator_dipole_forward(dipoles, cell, positions, neighbor_indices, neighbor_vectors):
    """CalculatorDipole.forward (smearing + lr_wavelength set)."""
    # TODO(synk): _validate_parameters / torch.profiler.record_function are pure
    # validation / instrumentation with no compute -> skipped.
    cell_np = np.asarray(cell, dtype=np.float64)
    basis_norms = np.linalg.norm(cell_np, axis=1)
    k_cutoff = 2.0 * np.pi / LR_WAVELENGTH
    ns = np.ceil(k_cutoff * basis_norms / (2.0 * np.pi)).astype(int)
    kvectors = _generate_kvectors_for_ewald_np(ns, cell_np)          # (K, 3) f64
    volume = float(abs(np.linalg.det(cell_np)))
    inv_vol = jnp.asarray([1.0 / volume], dtype=jnp.float32)

    n_atoms = dipoles.shape[0]
    n_pairs = neighbor_vectors.shape[0]
    p_pad = max(128, ((n_pairs + 127) // 128) * 128)   # lane-aligned pair axis

    dip_t = jnp.asarray(dipoles, jnp.float32).T                       # (3, N)
    pos_t = jnp.asarray(positions, jnp.float32).T                     # (3, N)
    kv_t = jnp.asarray(kvectors.T, jnp.float32)                       # (3, K)
    idx_t = jnp.zeros((2, p_pad), jnp.int32).at[:, :n_pairs].set(
        jnp.asarray(neighbor_indices, jnp.int32).T)
    vec_t = jnp.zeros((3, p_pad), jnp.float32).at[:, :n_pairs].set(
        jnp.asarray(neighbor_vectors, jnp.float32).T)

    kernel = partial(_fused_dipole_kernel, smearing=SMEARING,
                     full_neighbor_list=FULL_NEIGHBOR_LIST, prefactor=PREFACTOR)
    out_t = pl.pallas_call(
        kernel,
        out_shape=jax.ShapeDtypeStruct((3, n_atoms), jnp.float32),
        in_specs=[
            pl.BlockSpec(memory_space=pltpu.MemorySpace.SMEM),   # inv_vol (1,)
            pl.BlockSpec(memory_space=pltpu.MemorySpace.VMEM),   # dipoles^T
            pl.BlockSpec(memory_space=pltpu.MemorySpace.VMEM),   # positions^T
            pl.BlockSpec(memory_space=pltpu.MemorySpace.VMEM),   # neighbor_indices^T
            pl.BlockSpec(memory_space=pltpu.MemorySpace.VMEM),   # neighbor_vectors^T
            pl.BlockSpec(memory_space=pltpu.MemorySpace.VMEM),   # kvectors^T
        ],
        out_specs=pl.BlockSpec(memory_space=pltpu.MemorySpace.VMEM),
    )(inv_vol, dip_t, pos_t, idx_t, vec_t, kv_t)
    return out_t.T


# ------------------------- pure-numpy float64 reference (check) ----------------------
def _reference_forward_np(dipoles, cell, positions, neighbor_indices, neighbor_vectors):
    dip = np.asarray(dipoles, dtype=np.float64)
    cell64 = np.asarray(cell, dtype=np.float64)
    pos = np.asarray(positions, dtype=np.float64)
    idx = np.asarray(neighbor_indices)
    v = np.asarray(neighbor_vectors, dtype=np.float64)

    r = np.linalg.norm(v, axis=-1, keepdims=True)
    x = r / (math.sqrt(2.0) * SMEARING)
    erfc_x = np.vectorize(math.erfc)(x)
    g = np.exp(-x * x)
    B = erfc_x / r ** 3 + SQRT_2_OVER_PI / SMEARING * g / r ** 2
    C = (3.0 * erfc_x / r ** 5
         + SQRT_2_OVER_PI * (3.0 / (SMEARING * r ** 2) + 1.0 / SMEARING ** 3) * g / r ** 2)
    eye = np.eye(3)
    T = B[..., None] * eye - C[..., None] * (v[:, :, None] * v[:, None, :])   # (P,3,3)

    ai = idx[:, 0]
    aj = idx[:, 1]
    contrib_i = np.einsum("pab,pb->pa", T, dip[aj])
    pot = np.zeros_like(dip)
    np.add.at(pot, ai, contrib_i)
    contrib_j = np.einsum("pab,pb->pa", T, dip[ai])
    np.add.at(pot, aj, contrib_j)
    pot_sr = pot / 2.0

    basis_norms = np.linalg.norm(cell64, axis=1)
    ns = np.ceil((2.0 * np.pi / LR_WAVELENGTH) * basis_norms / (2.0 * np.pi)).astype(int)
    kvectors = _generate_kvectors_for_ewald_np(ns, cell64)
    ksq = np.sum(kvectors ** 2, axis=1)
    G = np.where(ksq > 0.0,
                 4.0 * np.pi * np.exp(-0.5 * SMEARING ** 2 * ksq)
                 / np.where(ksq > 0.0, ksq, 1.0),
                 0.0)
    trig = kvectors @ pos.T
    c = np.cos(trig)
    s = np.sin(trig)
    sc = np.stack([c, s], axis=0)
    mu_k = dip @ kvectors.T
    sc_summed_G = np.einsum("fki,ik,k->fk", sc, mu_k, G)
    energy = np.einsum("fk,fki,kc->ic", sc_summed_G, sc, kvectors)
    volume = abs(np.linalg.det(cell64))
    energy = energy / volume
    energy = energy - dip * _self_contribution(SMEARING)
    energy = energy + (4.0 * np.pi / (3.0 * volume)) * dip.sum(axis=0)
    pot_lr = energy / 2.0
    return PREFACTOR * (pot_sr + pot_lr)


# ---------------------------------------- main ---------------------------------------
if __name__ == "__main__":
    key = jax.random.PRNGKey(0)
    n_atoms = 8

    # jittered 2x2x2 grid inside an L = 8 cubic cell (keeps pairs well separated)
    base = jnp.array([[x, y, z] for x in (2.0, 6.0) for y in (2.0, 6.0) for z in (2.0, 6.0)],
                     dtype=jnp.float32)
    k1, k2 = jax.random.split(key)
    positions = base + 0.5 * jax.random.normal(k1, (n_atoms, 3), dtype=jnp.float32)
    dipoles = jax.random.normal(k2, (n_atoms, 3), dtype=jnp.float32)
    cell = 8.0 * jnp.eye(3, dtype=jnp.float32)

    # half neighbor list: all pairs i < j, pair vectors r_j - r_i
    pairs = [(i, j) for i in range(n_atoms) for j in range(i + 1, n_atoms)]
    neighbor_indices = jnp.array(pairs, dtype=jnp.int32)                     # (28, 2)
    neighbor_vectors = positions[neighbor_indices[:, 1]] - positions[neighbor_indices[:, 0]]

    out = calculator_dipole_forward(dipoles, cell, positions, neighbor_indices, neighbor_vectors)
    out = jax.block_until_ready(out)

    ref = _reference_forward_np(dipoles, cell, positions, neighbor_indices, neighbor_vectors)
    np.testing.assert_allclose(np.asarray(out), ref, rtol=2e-3, atol=2e-3)
    print("KERNEL_OK")
</pallas_src>

<mosaic_0001>
module attributes {stable_mosaic.version = 11 : i64} {
  func.func @_fused_dipole_kernel(%arg0: memref<1xf32, #tpu.memory_space<smem>>, %arg1: memref<3x8xf32, #tpu.memory_space<vmem>>, %arg2: memref<3x8xf32, #tpu.memory_space<vmem>>, %arg3: memref<2x128xi32, #tpu.memory_space<vmem>>, %arg4: memref<3x128xf32, #tpu.memory_space<vmem>>, %arg5: memref<3x64xf32, #tpu.memory_space<vmem>>, %arg6: memref<3x8xf32, #tpu.memory_space<vmem>>) attributes {dimension_semantics = [], scalar_prefetch = 0 : i64, scratch_operands = 0 : i64, tpu.core_type = #tpu.core_type<tc>} {
    %c0 = arith.constant 0 : index
    %c0_0 = arith.constant 0 : index
    %0 = vector.load %arg1[%c0, %c0_0] : memref<3x8xf32, #tpu.memory_space<vmem>>, vector<3x8xf32>
    %c0_1 = arith.constant 0 : index
    %c0_2 = arith.constant 0 : index
    %1 = vector.load %arg2[%c0_1, %c0_2] : memref<3x8xf32, #tpu.memory_space<vmem>>, vector<3x8xf32>
    %c0_3 = arith.constant 0 : index
    %c0_4 = arith.constant 0 : index
    %2 = vector.load %arg3[%c0_3, %c0_4] : memref<2x128xi32, #tpu.memory_space<vmem>>, vector<2x128xi32>
    %c0_5 = arith.constant 0 : index
    %c0_6 = arith.constant 0 : index
    %3 = vector.load %arg4[%c0_5, %c0_6] : memref<3x128xf32, #tpu.memory_space<vmem>>, vector<3x128xf32>
    %c0_7 = arith.constant 0 : index
    %c0_8 = arith.constant 0 : index
    %4 = vector.load %arg5[%c0_7, %c0_8] : memref<3x64xf32, #tpu.memory_space<vmem>>, vector<3x64xf32>
    %5 = arith.mulf %3, %3 : vector<3x128xf32>
    %cst = arith.constant dense<0.000000e+00> : vector<128xf32>
    %6 = vector.multi_reduction <add>, %5, %cst [0] : vector<3x128xf32> to vector<128xf32>
    %7 = vector.shape_cast %6 : vector<128xf32> to vector<1x128xf32>
    %cst_9 = arith.constant 0.000000e+00 : f32
    %8 = vector.broadcast %cst_9 : f32 to vector<1x128xf32>
    %9 = arith.cmpf ogt, %7, %8 : vector<1x128xf32>
    %cst_10 = arith.constant 1.000000e+00 : f32
    %10 = vector.broadcast %cst_10 : f32 to vector<1x128xf32>
    %11 = arith.select %9, %7, %10 : vector<1x128xi1>, vector<1x128xf32>
    %12 = math.rsqrt %11 : vector<1x128xf32>
    %13 = arith.mulf %7, %12 : vector<1x128xf32>
    %14 = arith.mulf %12, %12 : vector<1x128xf32>
    %15 = arith.mulf %14, %12 : vector<1x128xf32>
    %16 = arith.mulf %15, %14 : vector<1x128xf32>
    %cst_11 = arith.constant 0.707106769 : f32
    %17 = vector.broadcast %cst_11 : f32 to vector<1x128xf32>
    %18 = arith.mulf %13, %17 : vector<1x128xf32>
    %cst_12 = arith.constant -5.000000e-01 : f32
    %19 = vector.broadcast %cst_12 : f32 to vector<1x128xf32>
    %20 = arith.mulf %19, %7 : vector<1x128xf32>
    %21 = math.exp %20 : vector<1x128xf32>
    %cst_13 = arith.constant 0.327591091 : f32
    %22 = vector.broadcast %cst_13 : f32 to vector<1x128xf32>
    %23 = arith.mulf %22, %18 : vector<1x128xf32>
    %cst_14 = arith.constant 1.000000e+00 : f32
    %24 = vector.broadcast %cst_14 : f32 to vector<1x128xf32>
    %25 = arith.addf %24, %23 : vector<1x128xf32>
    %26 = tpu.reciprocal %25 {approx = true} : vector<1x128xf32> -> vector<1x128xf32>
    %cst_15 = arith.constant 1.06140542 : f32
    %27 = vector.broadcast %cst_15 : f32 to vector<1x128xf32>
    %28 = arith.mulf %26, %27 : vector<1x128xf32>
    %cst_16 = arith.constant -1.45315206 : f32
    %29 = vector.broadcast %cst_16 : f32 to vector<1x128xf32>
    %30 = arith.addf %29, %28 : vector<1x128xf32>
    %31 = arith.mulf %26, %30 : vector<1x128xf32>
    %cst_17 = arith.constant 1.42141378 : f32
    %32 = vector.broadcast %cst_17 : f32 to vector<1x128xf32>
    %33 = arith.addf %32, %31 : vector<1x128xf32>
    %34 = arith.mulf %26, %33 : vector<1x128xf32>
    %cst_18 = arith.constant -0.284496725 : f32
    %35 = vector.broadcast %cst_18 : f32 to vector<1x128xf32>
    %36 = arith.addf %35, %34 : vector<1x128xf32>
    %37 = arith.mulf %26, %36 : vector<1x128xf32>
    %cst_19 = arith.constant 0.254829586 : f32
    %38 = vector.broadcast %cst_19 : f32 to vector<1x128xf32>
    %39 = arith.addf %38, %37 : vector<1x128xf32>
    %40 = arith.mulf %26, %39 : vector<1x128xf32>
    %41 = arith.mulf %40, %21 : vector<1x128xf32>
    %42 = arith.mulf %41, %15 : vector<1x128xf32>
    %cst_20 = arith.constant 0.797884583 : f32
    %43 = vector.broadcast %cst_20 : f32 to vector<1x128xf32>
    %44 = arith.mulf %43, %21 : vector<1x128xf32>
    %45 = arith.mulf %44, %14 : vector<1x128xf32>
    %46 = arith.addf %42, %45 : vector<1x128xf32>
    %cst_21 = arith.constant 3.000000e+00 : f32
    %47 = vector.broadcast %cst_21 : f32 to vector<1x128xf32>
    %48 = arith.mulf %47, %41 : vector<1x128xf32>
    %49 = arith.mulf %48, %16 : vector<1x128xf32>
    %cst_22 = arith.constant 0.797884583 : f32
    %50 = vector.broadcast %cst_22 : f32 to vector<1x128xf32>
    %51 = arith.mulf %50, %21 : vector<1x128xf32>
    %cst_23 = arith.constant 3.000000e+00 : f32
    %52 = vector.broadcast %cst_23 : f32 to vector<1x128xf32>
    %53 = arith.mulf %52, %14 : vector<1x128xf32>
    %cst_24 = arith.constant 1.000000e+00 : f32
    %54 = vector.broadcast %cst_24 : f32 to vector<1x128xf32>
    %55 = arith.addf %53, %54 : vector<1x128xf32>
    %56 = arith.mulf %51, %55 : vector<1x128xf32>
    %57 = arith.mulf %56, %14 : vector<1x128xf32>
    %58 = arith.addf %49, %57 : vector<1x128xf32>
    %cst_25 = arith.constant 0.000000e+00 : f32
    %59 = vector.broadcast %cst_25 : f32 to vector<1x128xf32>
    %60 = arith.select %9, %46, %59 : vector<1x128xi1>, vector<1x128xf32>
    %cst_26 = arith.constant 0.000000e+00 : f32
    %61 = vector.broadcast %cst_26 : f32 to vector<1x128xf32>
    %62 = arith.select %9, %58, %61 : vector<1x128xi1>, vector<1x128xf32>
    %63 = vector.extract_strided_slice %2 {offsets = [0, 0], sizes = [1, 128], strides = [1, 1]} : vector<2x128xi32> to vector<1x128xi32>
    %64 = vector.extract_strided_slice %2 {offsets = [1, 0], sizes = [1, 128], strides = [1, 1]} : vector<2x128xi32> to vector<1x128xi32>
    %65 = tpu.concatenate %64, %63 in 1 : vector<1x128xi32>, vector<1x128xi32> -> vector<1x256xi32>
    %66 = tpu.concatenate %63, %64 in 1 : vector<1x128xi32>, vector<1x128xi32> -> vector<1x256xi32>
    %67 = tpu.concatenate %3, %3 in 1 : vector<3x128xf32>, vector<3x128xf32> -> vector<3x256xf32>
    %68 = tpu.concatenate %60, %60 in 1 : vector<1x128xf32>, vector<1x128xf32> -> vector<1x256xf32>
    %69 = tpu.concatenate %62, %62 in 1 : vector<1x128xf32>, vector<1x128xf32> -> vector<1x256xf32>
    %70 = tpu.iota {dimensions = array<i32: 0>} : vector<8x256xi32>
    %71 = vector.broadcast %65 : vector<1x256xi32> to vector<8x256xi32>
    %72 = arith.cmpi eq, %70, %71 : vector<8x256xi32>
    %73 = arith.extui %72 : vector<8x256xi1> to vector<8x256xi32>
    %74 = arith.sitofp %73 : vector<8x256xi32> to vector<8x256xf32>
    %75 = vector.broadcast %66 : vector<1x256xi32> to vector<8x256xi32>
    %76 = arith.cmpi eq, %70, %75 : vector<8x256xi32>
    %77 = arith.extui %76 : vector<8x256xi1> to vector<8x256xi32>
    %78 = arith.sitofp %77 : vector<8x256xi32> to vector<8x256xf32>
    %cst_27 = arith.constant dense<0.000000e+00> : vector<3x256xf32>
    %79 = tpu.matmul %0, %74, %cst_27 {dimension_numbers = #tpu.dot_dimension_numbers<[1], [0], [0], [1], [0, 0, 1, 1], [], []>, precision = #tpu.contract_precision<fp32>} : vector<3x8xf32>, vector<8x256xf32>, vector<3x256xf32> -> vector<3x256xf32>
    %80 = arith.mulf %67, %79 : vector<3x256xf32>
    %cst_28 = arith.constant dense<0.000000e+00> : vector<256xf32>
    %81 = vector.multi_reduction <add>, %80, %cst_28 [0] : vector<3x256xf32> to vector<256xf32>
    %82 = vector.shape_cast %81 : vector<256xf32> to vector<1x256xf32>
    %83 = vector.broadcast %68 : vector<1x256xf32> to vector<3x256xf32>
    %84 = arith.mulf %83, %79 : vector<3x256xf32>
    %85 = arith.mulf %69, %82 : vector<1x256xf32>
    %86 = vector.broadcast %85 : vector<1x256xf32> to vector<3x256xf32>
    %87 = arith.mulf %86, %67 : vector<3x256xf32>
    %88 = arith.subf %84, %87 : vector<3x256xf32>
    %cst_29 = arith.constant dense<0.000000e+00> : vector<3x8xf32>
    %89 = tpu.matmul %88, %78, %cst_29 {dimension_numbers = #tpu.dot_dimension_numbers<[1], [1], [0], [0], [0, 0, 1, 0], [], []>, precision = #tpu.contract_precision<fp32>} : vector<3x256xf32>, vector<8x256xf32>, vector<3x8xf32> -> vector<3x8xf32>
    %cst_30 = arith.constant 5.000000e-01 : f32
    %90 = vector.broadcast %cst_30 : f32 to vector<3x8xf32>
    %91 = arith.mulf %89, %90 : vector<3x8xf32>
    %92 = arith.mulf %4, %4 : vector<3x64xf32>
    %cst_31 = arith.constant dense<0.000000e+00> : vector<64xf32>
    %93 = vector.multi_reduction <add>, %92, %cst_31 [0] : vector<3x64xf32> to vector<64xf32>
    %94 = vector.shape_cast %93 : vector<64xf32> to vector<1x64xf32>
    %cst_32 = arith.constant 0.000000e+00 : f32
    %95 = vector.broadcast %cst_32 : f32 to vector<1x64xf32>
    %96 = arith.cmpf ogt, %94, %95 : vector<1x64xf32>
    %cst_33 = arith.constant -5.000000e-01 : f32
    %97 = vector.broadcast %cst_33 : f32 to vector<1x64xf32>
    %98 = arith.mulf %97, %94 : vector<1x64xf32>
    %99 = math.exp %98 : vector<1x64xf32>
    %cst_34 = arith.constant 12.566371 : f32
    %100 = vector.broadcast %cst_34 : f32 to vector<1x64xf32>
    %101 = arith.mulf %100, %99 : vector<1x64xf32>
    %cst_35 = arith.constant 1.000000e+00 : f32
    %102 = vector.broadcast %cst_35 : f32 to vector<1x64xf32>
    %103 = arith.select %96, %94, %102 : vector<1x64xi1>, vector<1x64xf32>
    %104 = arith.divf %101, %103 : vector<1x64xf32>
    %cst_36 = arith.constant 0.000000e+00 : f32
    %105 = vector.broadcast %cst_36 : f32 to vector<1x64xf32>
    %106 = arith.select %96, %104, %105 : vector<1x64xi1>, vector<1x64xf32>
    %cst_37 = arith.constant dense<0.000000e+00> : vector<8x64xf32>
    %107 = tpu.matmul %1, %4, %cst_37 {dimension_numbers = #tpu.dot_dimension_numbers<[0], [0], [1], [1], [0, 1, 1, 1], [], []>, precision = #tpu.contract_precision<fp32>} : vector<3x8xf32>, vector<3x64xf32>, vector<8x64xf32> -> vector<8x64xf32>
    %108 = math.cos %107 : vector<8x64xf32>
    %109 = math.sin %107 : vector<8x64xf32>
    %cst_38 = arith.constant dense<0.000000e+00> : vector<8x64xf32>
    %110 = tpu.matmul %0, %4, %cst_38 {dimension_numbers = #tpu.dot_dimension_numbers<[0], [0], [1], [1], [0, 1, 1, 1], [], []>, precision = #tpu.contract_precision<fp32>} : vector<3x8xf32>, vector<3x64xf32>, vector<8x64xf32> -> vector<8x64xf32>
    %111 = arith.mulf %108, %110 : vector<8x64xf32>
    %cst_39 = arith.constant dense<0.000000e+00> : vector<64xf32>
    %112 = vector.multi_reduction <add>, %111, %cst_39 [0] : vector<8x64xf32> to vector<64xf32>
    %113 = vector.shape_cast %112 : vector<64xf32> to vector<1x64xf32>
    %114 = arith.mulf %113, %106 : vector<1x64xf32>
    %115 = arith.mulf %109, %110 : vector<8x64xf32>
    %cst_40 = arith.constant dense<0.000000e+00> : vector<64xf32>
    %116 = vector.multi_reduction <add>, %115, %cst_40 [0] : vector<8x64xf32> to vector<64xf32>
    %117 = vector.shape_cast %116 : vector<64xf32> to vector<1x64xf32>
    %118 = arith.mulf %117, %106 : vector<1x64xf32>
    %119 = vector.broadcast %114 : vector<1x64xf32> to vector<8x64xf32>
    %120 = arith.mulf %119, %108 : vector<8x64xf32>
    %121 = vector.broadcast %118 : vector<1x64xf32> to vector<8x64xf32>
    %122 = arith.mulf %121, %109 : vector<8x64xf32>
    %123 = arith.addf %120, %122 : vector<8x64xf32>
    %cst_41 = arith.constant dense<0.000000e+00> : vector<3x8xf32>
    %124 = tpu.matmul %4, %123, %cst_41 {dimension_numbers = #tpu.dot_dimension_numbers<[1], [1], [0], [0], [0, 0, 1, 0], [], []>, precision = #tpu.contract_precision<fp32>} : vector<3x64xf32>, vector<8x64xf32>, vector<3x8xf32> -> vector<3x8xf32>
    %c0_42 = arith.constant 0 : index
    %125 = memref.load %arg0[%c0_42] : memref<1xf32, #tpu.memory_space<smem>>
    %126 = vector.broadcast %125 : f32 to vector<3x8xf32>
    %127 = arith.mulf %124, %126 : vector<3x8xf32>
    %cst_43 = arith.constant 0.531923056 : f32
    %128 = vector.broadcast %cst_43 : f32 to vector<3x8xf32>
    %129 = arith.mulf %0, %128 : vector<3x8xf32>
    %130 = arith.subf %127, %129 : vector<3x8xf32>
    %cst_44 = arith.constant dense<0.000000e+00> : vector<3xf32>
    %131 = vector.multi_reduction <add>, %0, %cst_44 [1] : vector<3x8xf32> to vector<3xf32>
    %132 = vector.shape_cast %131 : vector<3xf32> to vector<3x1xf32>
    %cst_45 = arith.constant 4.18879032 : f32
    %133 = arith.mulf %cst_45, %125 : f32
    %134 = vector.broadcast %133 : f32 to vector<3x1xf32>
    %135 = arith.mulf %134, %132 : vector<3x1xf32>
    %136 = vector.broadcast %135 : vector<3x1xf32> to vector<3x8xf32>
    %137 = arith.addf %130, %136 : vector<3x8xf32>
    %cst_46 = arith.constant 5.000000e-01 : f32
    %138 = vector.broadcast %cst_46 : f32 to vector<3x8xf32>
    %139 = arith.mulf %137, %138 : vector<3x8xf32>
    %140 = arith.addf %91, %139 : vector<3x8xf32>
    %cst_47 = arith.constant 1.000000e+00 : f32
    %141 = vector.broadcast %cst_47 : f32 to vector<3x8xf32>
    %142 = arith.mulf %141, %140 : vector<3x8xf32>
    %c0_48 = arith.constant 0 : index
    %c0_49 = arith.constant 0 : index
    %143 = vector.load %arg6[%c0_48, %c0_49] : memref<3x8xf32, #tpu.memory_space<vmem>>, vector<3x8xf32>
    tpu.vector_store %arg6[%c0_48, %c0_49], %142 {strides = array<i32>} : memref<3x8xf32, #tpu.memory_space<vmem>>, vector<3x8xf32>,
    return
  }
}

</mosaic_0001>

<llo_original>
// kernel: tpu_custom_call.1
$region0: #{tpu_custom_call.1}
  #allocation0 [shape = 'u32[]', space=smem, size = 0x4, offset = 0x4, fixed_abs, tag = 'smem constant byte address 0x4 - core index']
  #allocation1 [shape = 'u32[72,128]{1,0:T(1,128)}', space=vmem, size = 0x9000, scoped, tag = 'internal scratch']
  #allocation2 [shape = 'f32[1]{0:T(128)S(6)}', space=smem, size = 0x200, scoped, tag = 'scoped memory for tpu_custom_call.1']
  %s0 = inlined_call_operand.<no memory space> [shape: f32[1], index: 0, kind: input, shape index: {}]
  %s1 = inlined_call_operand.hbm [shape: f32[3,8], index: 1, kind: input, shape index: {}]
  %s2 = inlined_call_operand.hbm [shape: f32[3,8], index: 2, kind: input, shape index: {}]
  %s3 = inlined_call_operand.hbm [shape: s32[2,128], index: 3, kind: input, shape index: {}]
  %s4 = inlined_call_operand.vmem [shape: f32[3,128], index: 4, kind: input, shape index: {}]
  %s5 = inlined_call_operand.hbm [shape: f32[3,64], index: 5, kind: input, shape index: {}]
  %s6 = inlined_call_operand.hbm [shape: f32[3,8], index: 6, kind: output, shape index: {}]
  %s7 = sld [smem:[#allocation0]]
  $region50: #{tpu_custom_call.1} parent=0
    _
  %s9 = ssub.s32 1, %s7
  %s10 = scalar_select 0, %s9, %s7
  %11 = sst [smem:[#allocation2]] %s0
  $region1: #{tpu_custom_call.1} parent=0
    #allocation3 [shape = 'u8[2048]{0}', space=vmem, size = 0x800, scoped, tag = 'input window, operand 1, single buffered']
    #allocation4 [shape = 's32[1]{0}', space=sflag, size = 0x4, scoped, tag = 'scoped memory for tpu_custom_call.1']
    #allocation5 [shape = 's32[1]{0}', space=sflag, size = 0x4, scoped, tag = 'scoped memory for tpu_custom_call.1']
    #allocation6 [shape = 'u8[2048]{0}', space=vmem, size = 0x800, scoped, tag = 'input window, operand 2, single buffered']
    #allocation7 [shape = 's32[1]{0}', space=sflag, size = 0x4, scoped, tag = 'scoped memory for tpu_custom_call.1']
    #allocation8 [shape = 'u8[1024]{0}', space=vmem, size = 0x400, scoped, tag = 'input window, operand 3, single buffered']
    #allocation9 [shape = 'u8[2048]{0}', space=vmem, size = 0x800, scoped, tag = 'input window, operand 5, single buffered']
    #allocation10 [shape = 's32[1]{0}', space=sflag, size = 0x4, scoped, tag = 'scoped memory for tpu_custom_call.1']
    #allocation11 [shape = 'u8[2048]{0}', space=vmem, size = 0x800, scoped, tag = 'output window, operand 0, single buffered']
    %12 = vsyncpa [#allocation4], 0
    %13 = vsyncpa [#allocation7], 0
    %14 = vsyncpa [#allocation10], 0
    %15 = vsyncpa [#allocation5], 0
    // Predicated region
    $region2: #{tpu_custom_call.1} parent=1 // pred_check
      _
    $region3: #{tpu_custom_call.1} parent=1 // pred_check_branch
      %17 = sbr.rel (0) target = $region5
    $region4: #{tpu_custom_call.1} parent=1 // pred_region
      _
    $region5: #{tpu_custom_call.1} parent=1 // pred_fallthru
      _
    // Predicated region
    $region6: #{tpu_custom_call.1} parent=1 // pred_check
      _
    $region7: #{tpu_custom_call.1} parent=1 // pred_check_branch
      %19 = sbr.rel (0) target = $region9
    $region8: #{tpu_custom_call.1} parent=1 // pred_region
      %21 = vsyncadd [#allocation4], 0
      %s23 = sshll.u32 %s1, 4
      %s24 = int_to_ptr.hbm [resolvable:$true] %s23
      %s25 = sshll.u32 [#allocation3], 4
      %s26 = int_to_ptr.vmem [resolvable:$true] %s25
      %28 = dma.hbm_to_vmem [thread:$0]  %s24, 64, %s26, [#allocation4]
    $region9: #{tpu_custom_call.1} parent=1 // pred_fallthru
      _
    // Predicated region
    $region10: #{tpu_custom_call.1} parent=1 // pred_check
      _
    $region11: #{tpu_custom_call.1} parent=1 // pred_check_branch
      %30 = sbr.rel (0) target = $region13
    $region12: #{tpu_custom_call.1} parent=1 // pred_region
      %32 = vsyncadd [#allocation7], 0
      %s34 = sshll.u32 %s2, 4
      %s35 = int_to_ptr.hbm [resolvable:$true] %s34
      %s36 = sshll.u32 [#allocation6], 4
      %s37 = int_to_ptr.vmem [resolvable:$true] %s36
      %39 = dma.hbm_to_vmem [thread:$0]  %s35, 64, %s37, [#allocation7]
    $region13: #{tpu_custom_call.1} parent=1 // pred_fallthru
      _
    // Predicated region
    $region14: #{tpu_custom_call.1} parent=1 // pred_check
      _
    $region15: #{tpu_custom_call.1} parent=1 // pred_check_branch
      %41 = sbr.rel (0) target = $region17
    $region16: #{tpu_custom_call.1} parent=1 // pred_region
      %43 = vsyncadd [#allocation7], 0
      %s45 = sshll.u32 %s3, 4
      %s46 = int_to_ptr.hbm [resolvable:$true] %s45
      %s47 = sshll.u32 [#allocation8], 4
      %s48 = int_to_ptr.vmem [resolvable:$true] %s47
      %50 = dma.hbm_to_vmem [thread:$0]  %s46, 32, %s48, [#allocation7]
    $region17: #{tpu_custom_call.1} parent=1 // pred_fallthru
      _
    // Predicated region
    $region18: #{tpu_custom_call.1} parent=1 // pred_check
      _
    $region19: #{tpu_custom_call.1} parent=1 // pred_check_branch
      %52 = sbr.rel (0) target = $region21
    $region20: #{tpu_custom_call.1} parent=1 // pred_region
      _
    $region21: #{tpu_custom_call.1} parent=1 // pred_fallthru
      _
    // Predicated region
    $region22: #{tpu_custom_call.1} parent=1 // pred_check
      _
    $region23: #{tpu_custom_call.1} parent=1 // pred_check_branch
      %54 = sbr.rel (0) target = $region25
    $region24: #{tpu_custom_call.1} parent=1 // pred_region
      %56 = vsyncadd [#allocation10], 0
      %s58 = sshll.u32 %s5, 4
      %s59 = int_to_ptr.hbm [resolvable:$true] %s58
      %s60 = sshll.u32 [#allocation9], 4
      %s61 = int_to_ptr.vmem [resolvable:$true] %s60
      %63 = dma.hbm_to_vmem [thread:$0]  %s59, 64, %s61, [#allocation10]
    $region25: #{tpu_custom_call.1} parent=1 // pred_fallthru
      _
    // Predicated region
    $region26: #{tpu_custom_call.1} parent=1 // pred_check
      _
    $region27: #{tpu_custom_call.1} parent=1 // pred_check_branch
      %65 = sbr.rel (0) target = $region29
    $region28: #{tpu_custom_call.1} parent=1 // pred_region
      %67 = dma.done [#allocation4], 64
    $region29: #{tpu_custom_call.1} parent=1 // pred_fallthru
      _
    // Predicated region
    $region30: #{tpu_custom_call.1} parent=1 // pred_check
      _
    $region31: #{tpu_custom_call.1} parent=1 // pred_check_branch
      %69 = sbr.rel (0) target = $region33
    $region32: #{tpu_custom_call.1} parent=1 // pred_region
      %71 = dma.done [#allocation7], 64
    $region33: #{tpu_custom_call.1} parent=1 // pred_fallthru
      _
    // Predicated region
    $region34: #{tpu_custom_call.1} parent=1 // pred_check
      _
    $region35: #{tpu_custom_call.1} parent=1 // pred_check_branch
      %73 = sbr.rel (0) target = $region37
    $region36: #{tpu_custom_call.1} parent=1 // pred_region
      %75 = dma.done [#allocation7], 32
    $region37: #{tpu_custom_call.1} parent=1 // pred_fallthru
      _
    // Predicated region
    $region38: #{tpu_custom_call.1} parent=1 // pred_check
      _
    $region39: #{tpu_custom_call.1} parent=1 // pred_check_branch
      %77 = sbr.rel (0) target = $region41
    $region40: #{tpu_custom_call.1} parent=1 // pred_region
      %79 = dma.done [#allocation10], 64
    $region41: #{tpu_custom_call.1} parent=1 // pred_fallthru
      _
    %v80 = vld [vmem:[#allocation3] sm:$0x7]
    %v81 = vld [vmem:[#allocation6] sm:$0x7]
    %v82 = vld [vmem:[#allocation8] sm:$0x3]
    %v83 = vld [vmem:[%s4] sm:$0x7]
    %v84 = vld [vmem:[#allocation9] sm:$0x7]
    %v85 = vmul.f32 %v83, %v83
    %vm86 = vcmask 1042432
    %v87 = vsel %vm86, %v85, 0.0
    %v88 = vrot.slane %v87, 4
    %v89 = vadd.f32 %v87, %v88
    %v90 = vrot.slane %v89, 2
    %v91 = vadd.f32 %v89, %v90
    %v92 = vrot.slane %v91, 1
    %v93 = vadd.f32 %v91, %v92
    %vm94 = vcmp.gt.f32.partialorder %v93, 0.0
    %v95 = vsel %vm94, %v93, 1.0
    %v96 = vrsqrt.pop %v95
    %v97 = vmul.f32 %v96, %v95
    %v98 = vmul.f32 %v97, %v96
    %v99 = vmul.f32 0.5, %v98
    %v100 = vsub.f32 1.5, %v99
    %v101 = vmul.f32 %v96, %v100
    %vm102 = vweird.f32 %v95
    %vm103 = vweird.f32 %v96
    %vm104 = vmor %vm102, %vm103
    %v105 = vsel %vm104, %v96, %v101
    %v106 = vmul.f32 %v93, %v105
    %v107 = vmul.f32 %v105, %v105
    %v108 = vmul.f32 %v107, %v105
    %v109 = vmul.f32 %v108, %v107
    %v110 = vmul.f32 %v106, 0.70710677
    %v111 = vmul.f32 %v93, -0.5
    %v112 = vmul.f32 %v111, 1.442695
    %v113 = vpow.pop %v112
    %v114 = vmul.f32 %v110, 0.3275911
    %v115 = vadd.f32 %v114, 1.0
    %v116 = vrcp.pop %v115
    %v117 = vmul.f32 %v116, 1.0614054
    %v118 = vadd.f32 %v117, -1.4531521
    %v119 = vmul.f32 %v116, %v118
    %v120 = vadd.f32 %v119, 1.4214138
    %v121 = vmul.f32 %v116, %v120
    %v122 = vadd.f32 %v121, -0.28449672
    %v123 = vmul.f32 %v116, %v122
    %v124 = vadd.f32 %v123, 0.2548296
    %v125 = vmul.f32 %v116, %v124
    %v126 = vmul.f32 %v125, %v113
    %v127 = vmul.f32 %v126, %v108
    %v128 = vmul.f32 %v113, 0.7978846
    %v129 = vmul.f32 %v128, %v107
    %v130 = vadd.f32 %v127, %v129
    %v131 = vmul.f32 %v126, 3.0
    %v132 = vmul.f32 %v131, %v109
    %v133 = vmul.f32 %v107, 3.0
    %v134 = vadd.f32 %v133, 1.0
    %v135 = vmul.f32 %v128, %v134
    %v136 = vmul.f32 %v135, %v107
    %v137 = vadd.f32 %v132, %v136
    %v138 = vsel %vm94, %v130, 0.0
    %v139 = vsel %vm94, %v137, 0.0
    %v140 = vrot.slane %v82, 7
    %v141 = vrot.slane %v82, 1
    %v142 = vlaneseq
    %v143 = vshrl.u32 %v142, 7
    %v144 = vperm.slane %v82, 1
    %v145 = vperm.slane %v140, 1
    %vm146 = vcmp.eq.s32.totalorder %v143, %v144
    %vm147 = vcmp.eq.s32.totalorder %v143, %v145
    %v148 = vsel %vm146, 1, 0
    %v149 = vsel %vm147, 1, 0
    %v150 = vcvt.s32.f32 %v148
    %v151 = vcvt.s32.f32 %v149
    %v152 = vperm.slane %v82, 0
    %v153 = vperm.slane %v141, 0
    %vm154 = vcmp.eq.s32.totalorder %v143, %v152
    %vm155 = vcmp.eq.s32.totalorder %v143, %v153
    %v156 = vsel %vm154, 1, 0
    %v157 = vsel %vm155, 1, 0
    %v158 = vcvt.s32.f32 %v156
    %v159 = vcvt.s32.f32 %v157
    %vm160 = vcmask 64512
    %v162 = vsel %vm160, %v80, 0
    %164 = vmatpush.msra.mxu0 0.0
    %165 = vmatpush.msra.mxu0 0.0
    %166 = vmatpush.msra.mxu0 0.0
    %167 = vmatpush.msra.mxu0 0.0
    %168 = vmatpush.msra.mxu0 0.0
    %169 = vmatpush.msra.mxu0 0.0
    %170 = vmatpush.msra.mxu0 0.0
    %171 = vmatpush.msra.mxu0 0.0
    %172 = vmatpush.msra.mxu0 0.0
    %173 = vmatpush.msra.mxu0 0.0
    %174 = vmatpush.msra.mxu0 0.0
    %175 = vmatpush.msra.mxu0 0.0
    %176 = vmatpush.msra.mxu0 0.0
    %177 = vmatpush.msra.mxu0 0.0
    %178 = vmatpush.msra.mxu0 0.0
    %v179 = vand.u32 %v150, 4294901760
    %180 = vmatpush.msra.mxu0 %v179
    %v181 = vand.u32 %v162, 4294901760
    %v182 = vsub.f32 %v162, %v181
    %v183 = vand.u32 %v182, 4294901760
    %v184 = vsub.f32 %v182, %v183
    %v185 = vand.u32 %v184, 4294901760
    %186 = vmatmul.f32.gmra.mxu0 %v185
    %v187 = vpop.f32.mrf.mxu0
    %v188 = vadd.f32 0.0, %v187
    %189 = vdwg.mxu0
    %190 = vmatpush.msra.mxu0 0.0
    %191 = vmatpush.msra.mxu0 0.0
    %192 = vmatpush.msra.mxu0 0.0
    %193 = vmatpush.msra.mxu0 0.0
    %194 = vmatpush.msra.mxu0 0.0
    %195 = vmatpush.msra.mxu0 0.0
    %196 = vmatpush.msra.mxu0 0.0
    %197 = vmatpush.msra.mxu0 0.0
    %198 = vmatpush.msra.mxu0 0.0
    %199 = vmatpush.msra.mxu0 0.0
    %200 = vmatpush.msra.mxu0 0.0
    %201 = vmatpush.msra.mxu0 0.0
    %202 = vmatpush.msra.mxu0 0.0
    %203 = vmatpush.msra.mxu0 0.0
    %204 = vmatpush.msra.mxu0 0.0
    %v205 = vand.u32 %v150, 4294901760
    %v206 = vsub.f32 %v150, %v205
    %v207 = vand.u32 %v206, 4294901760
    %v208 = vsub.f32 %v206, %v207
    %v209 = vand.u32 %v208, 4294901760
    %210 = vmatpush.msra.mxu0 %v209
    %v211 = vand.u32 %v162, 4294901760
    %212 = vmatmul.f32.gmra.mxu0 %v211
    %v213 = vpop.f32.mrf.mxu0
    %v214 = vadd.f32 %v188, %v213
    %215 = vdwg.mxu0
    %216 = vmatpush.msra.mxu0 0.0
    %217 = vmatpush.msra.mxu0 0.0
    %218 = vmatpush.msra.mxu0 0.0
    %219 = vmatpush.msra.mxu0 0.0
    %220 = vmatpush.msra.mxu0 0.0
    %221 = vmatpush.msra.mxu0 0.0
    %222 = vmatpush.msra.mxu0 0.0
    %223 = vmatpush.msra.mxu0 0.0
    %224 = vmatpush.msra.mxu0 0.0
    %225 = vmatpush.msra.mxu0 0.0
    %226 = vmatpush.msra.mxu0 0.0
    %227 = vmatpush.msra.mxu0 0.0
    %228 = vmatpush.msra.mxu0 0.0
    %229 = vmatpush.msra.mxu0 0.0
    %230 = vmatpush.msra.mxu0 0.0
    %v231 = vand.u32 %v150, 4294901760
    %v232 = vsub.f32 %v150, %v231
    %233 = vmatpush.msra.mxu0 %v232
    %v234 = vand.u32 %v162, 4294901760
    %v235 = vsub.f32 %v162, %v234
    %236 = vmatmul.f32.gmra.mxu0 %v235
    %v237 = vpop.f32.mrf.mxu0
    %v238 = vadd.f32 %v214, %v237
    %239 = vdwg.mxu0
    %240 = vmatpush.msra.mxu0 0.0
    %241 = vmatpush.msra.mxu0 0.0
    %242 = vmatpush.msra.mxu0 0.0
    %243 = vmatpush.msra.mxu0 0.0
    %244 = vmatpush.msra.mxu0 0.0
    %245 = vmatpush.msra.mxu0 0.0
    %246 = vmatpush.msra.mxu0 0.0
    %247 = vmatpush.msra.mxu0 0.0
    %248 = vmatpush.msra.mxu0 0.0
    %249 = vmatpush.msra.mxu0 0.0
    %250 = vmatpush.msra.mxu0 0.0
    %251 = vmatpush.msra.mxu0 0.0
    %252 = vmatpush.msra.mxu0 0.0
    %253 = vmatpush.msra.mxu0 0.0
    %254 = vmatpush.msra.mxu0 0.0
    %v255 = vand.u32 %v150, 4294901760
    %256 = vmatpush.msra.mxu0 %v255
    %v257 = vand.u32 %v162, 4294901760
    %v258 = vsub.f32 %v162, %v257
    %v259 = vand.u32 %v258, 4294901760
    %260 = vmatmul.f32.gmra.mxu0 %v259
    %v261 = vpop.f32.mrf.mxu0
    %v262 = vadd.f32 %v238, %v261
    %263 = vdwg.mxu0
    %264 = vmatpush.msra.mxu0 0.0
    %265 = vmatpush.msra.mxu0 0.0
    %266 = vmatpush.msra.mxu0 0.0
    %267 = vmatpush.msra.mxu0 0.0
    %268 = vmatpush.msra.mxu0 0.0
    %269 = vmatpush.msra.mxu0 0.0
    %270 = vmatpush.msra.mxu0 0.0
    %271 = vmatpush.msra.mxu0 0.0
    %272 = vmatpush.msra.mxu0 0.0
    %273 = vmatpush.msra.mxu0 0.0
    %274 = vmatpush.msra.mxu0 0.0
    %275 = vmatpush.msra.mxu0 0.0
    %276 = vmatpush.msra.mxu0 0.0
    %277 = vmatpush.msra.mxu0 0.0
    %278 = vmatpush.msra.mxu0 0.0
    %v279 = vand.u32 %v150, 4294901760
    %v280 = vsub.f32 %v150, %v279
    %v281 = vand.u32 %v280, 4294901760
    %282 = vmatpush.msra.mxu0 %v281
    %v283 = vand.u32 %v162, 4294901760
    %284 = vmatmul.f32.gmra.mxu0 %v283
    %v285 = vpop.f32.mrf.mxu0
    %v286 = vadd.f32 %v262, %v285
    %287 = vdwg.mxu0
    %288 = vmatpush.msra.mxu0 0.0
    %289 = vmatpush.msra.mxu0 0.0
    %290 = vmatpush.msra.mxu0 0.0
    %291 = vmatpush.msra.mxu0 0.0
    %292 = vmatpush.msra.mxu0 0.0
    %293 = vmatpush.msra.mxu0 0.0
    %294 = vmatpush.msra.mxu0 0.0
    %295 = vmatpush.msra.mxu0 0.0
    %296 = vmatpush.msra.mxu0 0.0
    %297 = vmatpush.msra.mxu0 0.0
    %298 = vmatpush.msra.mxu0 0.0
    %299 = vmatpush.msra.mxu0 0.0
    %300 = vmatpush.msra.mxu0 0.0
    %301 = vmatpush.msra.mxu0 0.0
    %302 = vmatpush.msra.mxu0 0.0
    %v303 = vand.u32 %v150, 4294901760
    %304 = vmatpush.msra.mxu0 %v303
    %v305 = vand.u32 %v162, 4294901760
    %306 = vmatmul.f32.gmra.mxu0 %v305
    %v307 = vpop.f32.mrf.mxu0
    %v308 = vadd.f32 %v286, %v307
    %309 = vdwg.mxu0
    %310 = vmatpush.msra.mxu0 0.0
    %311 = vmatpush.msra.mxu0 0.0
    %312 = vmatpush.msra.mxu0 0.0
    %313 = vmatpush.msra.mxu0 0.0
    %314 = vmatpush.msra.mxu0 0.0
    %315 = vmatpush.msra.mxu0 0.0
    %316 = vmatpush.msra.mxu0 0.0
    %317 = vmatpush.msra.mxu0 0.0
    %318 = vmatpush.msra.mxu0 0.0
    %319 = vmatpush.msra.mxu0 0.0
    %320 = vmatpush.msra.mxu0 0.0
    %321 = vmatpush.msra.mxu0 0.0
    %322 = vmatpush.msra.mxu0 0.0
    %323 = vmatpush.msra.mxu0 0.0
    %324 = vmatpush.msra.mxu0 0.0
    %v325 = vand.u32 %v151, 4294901760
    %326 = vmatpush.msra.mxu0 %v325
    %v327 = vand.u32 %v162, 4294901760
    %v328 = vsub.f32 %v162, %v327
    %v329 = vand.u32 %v328, 4294901760
    %v330 = vsub.f32 %v328, %v329
    %v331 = vand.u32 %v330, 4294901760
    %332 = vmatmul.f32.gmra.mxu0 %v331
    %v333 = vpop.f32.mrf.mxu0
    %v334 = vadd.f32 0.0, %v333
    %335 = vdwg.mxu0
    %336 = vmatpush.msra.mxu0 0.0
    %337 = vmatpush.msra.mxu0 0.0
    %338 = vmatpush.msra.mxu0 0.0
    %339 = vmatpush.msra.mxu0 0.0
    %340 = vmatpush.msra.mxu0 0.0
    %341 = vmatpush.msra.mxu0 0.0
    %342 = vmatpush.msra.mxu0 0.0
    %343 = vmatpush.msra.mxu0 0.0
    %344 = vmatpush.msra.mxu0 0.0
    %345 = vmatpush.msra.mxu0 0.0
    %346 = vmatpush.msra.mxu0 0.0
    %347 = vmatpush.msra.mxu0 0.0
    %348 = vmatpush.msra.mxu0 0.0
    %349 = vmatpush.msra.mxu0 0.0
    %350 = vmatpush.msra.mxu0 0.0
    %v351 = vand.u32 %v151, 4294901760
    %v352 = vsub.f32 %v151, %v351
    %v353 = vand.u32 %v352, 4294901760
    %v354 = vsub.f32 %v352, %v353
    %v355 = vand.u32 %v354, 4294901760
    %356 = vmatpush.msra.mxu0 %v355
    %v357 = vand.u32 %v162, 4294901760
    %358 = vmatmul.f32.gmra.mxu0 %v357
    %v359 = vpop.f32.mrf.mxu0
    %v360 = vadd.f32 %v334, %v359
    %361 = vdwg.mxu0
    %362 = vmatpush.msra.mxu0 0.0
    %363 = vmatpush.msra.mxu0 0.0
    %364 = vmatpush.msra.mxu0 0.0
    %365 = vmatpush.msra.mxu0 0.0
    %366 = vmatpush.msra.mxu0 0.0
    %367 = vmatpush.msra.mxu0 0.0
    %368 = vmatpush.msra.mxu0 0.0
    %369 = vmatpush.msra.mxu0 0.0
    %370 = vmatpush.msra.mxu0 0.0
    %371 = vmatpush.msra.mxu0 0.0
    %372 = vmatpush.msra.mxu0 0.0
    %373 = vmatpush.msra.mxu0 0.0
    %374 = vmatpush.msra.mxu0 0.0
    %375 = vmatpush.msra.mxu0 0.0
    %376 = vmatpush.msra.mxu0 0.0
    %v377 = vand.u32 %v151, 4294901760
    %v378 = vsub.f32 %v151, %v377
    %379 = vmatpush.msra.mxu0 %v378
    %v380 = vand.u32 %v162, 4294901760
    %v381 = vsub.f32 %v162, %v380
    %382 = vmatmul.f32.gmra.mxu0 %v381
    %v383 = vpop.f32.mrf.mxu0
    %v384 = vadd.f32 %v360, %v383
    %385 = vdwg.mxu0
    %386 = vmatpush.msra.mxu0 0.0
    %387 = vmatpush.msra.mxu0 0.0
    %388 = vmatpush.msra.mxu0 0.0
    %389 = vmatpush.msra.mxu0 0.0
    %390 = vmatpush.msra.mxu0 0.0
    %391 = vmatpush.msra.mxu0 0.0
    %392 = vmatpush.msra.mxu0 0.0
    %393 = vmatpush.msra.mxu0 0.0
    %394 = vmatpush.msra.mxu0 0.0
    %395 = vmatpush.msra.mxu0 0.0
    %396 = vmatpush.msra.mxu0 0.0
    %397 = vmatpush.msra.mxu0 0.0
    %398 = vmatpush.msra.mxu0 0.0
    %399 = vmatpush.msra.mxu0 0.0
    %400 = vmatpush.msra.mxu0 0.0
    %v401 = vand.u32 %v151, 4294901760
    %402 = vmatpush.msra.mxu0 %v401
    %v403 = vand.u32 %v162, 4294901760
    %v404 = vsub.f32 %v162, %v403
    %v405 = vand.u32 %v404, 4294901760
    %406 = vmatmul.f32.gmra.mxu0 %v405
    %v407 = vpop.f32.mrf.mxu0
    %v408 = vadd.f32 %v384, %v407
    %409 = vdwg.mxu0
    %410 = vmatpush.msra.mxu0 0.0
    %411 = vmatpush.msra.mxu0 0.0
    %412 = vmatpush.msra.mxu0 0.0
    %413 = vmatpush.msra.mxu0 0.0
    %414 = vmatpush.msra.mxu0 0.0
    %415 = vmatpush.msra.mxu0 0.0
    %416 = vmatpush.msra.mxu0 0.0
    %417 = vmatpush.msra.mxu0 0.0
    %418 = vmatpush.msra.mxu0 0.0
    %419 = vmatpush.msra.mxu0 0.0
    %420 = vmatpush.msra.mxu0 0.0
    %421 = vmatpush.msra.mxu0 0.0
    %422 = vmatpush.msra.mxu0 0.0
    %423 = vmatpush.msra.mxu0 0.0
    %424 = vmatpush.msra.mxu0 0.0
    %v425 = vand.u32 %v151, 4294901760
    %v426 = vsub.f32 %v151, %v425
    %v427 = vand.u32 %v426, 4294901760
    %428 = vmatpush.msra.mxu0 %v427
    %v429 = vand.u32 %v162, 4294901760
    %430 = vmatmul.f32.gmra.mxu0 %v429
    %v431 = vpop.f32.mrf.mxu0
    %v432 = vadd.f32 %v408, %v431
    %433 = vdwg.mxu0
    %434 = vmatpush.msra.mxu0 0.0
    %435 = vmatpush.msra.mxu0 0.0
    %436 = vmatpush.msra.mxu0 0.0
    %437 = vmatpush.msra.mxu0 0.0
    %438 = vmatpush.msra.mxu0 0.0
    %439 = vmatpush.msra.mxu0 0.0
    %440 = vmatpush.msra.mxu0 0.0
    %441 = vmatpush.msra.mxu0 0.0
    %442 = vmatpush.msra.mxu0 0.0
    %443 = vmatpush.msra.mxu0 0.0
    %444 = vmatpush.msra.mxu0 0.0
    %445 = vmatpush.msra.mxu0 0.0
    %446 = vmatpush.msra.mxu0 0.0
    %447 = vmatpush.msra.mxu0 0.0
    %448 = vmatpush.msra.mxu0 0.0
    %v449 = vand.u32 %v151, 4294901760
    %450 = vmatpush.msra.mxu0 %v449
    %v451 = vand.u32 %v162, 4294901760
    %452 = vmatmul.f32.gmra.mxu0 %v451
    %v453 = vpop.f32.mrf.mxu0
    %v454 = vadd.f32 %v432, %v453
    %455 = vdwg.mxu0
    %v456 = vmul.f32 %v83, %v308
    %v457 = vmul.f32 %v83, %v454
    %v458 = vsel %vm86, %v456, 0.0
    %v459 = vrot.slane %v458, 4
    %v460 = vadd.f32 %v458, %v459
    %v461 = vrot.slane %v460, 2
    %v462 = vadd.f32 %v460, %v461
    %v463 = vrot.slane %v462, 1
    %v464 = vadd.f32 %v462, %v463
    %v465 = vsel %vm86, %v457, 0.0
    %v466 = vrot.slane %v465, 4
    %v467 = vadd.f32 %v465, %v466
    %v468 = vrot.slane %v467, 2
    %v469 = vadd.f32 %v467, %v468
    %v470 = vrot.slane %v469, 1
    %v471 = vadd.f32 %v469, %v470
    %v472 = vperm.slane %v138, 0
    %v473 = vmul.f32 %v472, %v308
    %v474 = vmul.f32 %v472, %v454
    %v475 = vmul.f32 %v139, %v464
    %v476 = vmul.f32 %v139, %v471
    %v477 = vperm.slane %v475, 0
    %v478 = vperm.slane %v476, 0
    %v479 = vmul.f32 %v477, %v83
    %v480 = vmul.f32 %v478, %v83
    %v481 = vsub.f32 %v473, %v479
    %v482 = vsub.f32 %v474, %v480
    %483 = vmatpush.xpose.msra.mxu0 0.0
    %484 = vmatpush.xpose.msra.mxu0 0.0
    %485 = vmatpush.xpose.msra.mxu0 0.0
    %486 = vmatpush.xpose.msra.mxu0 0.0
    %487 = vmatpush.xpose.msra.mxu0 0.0
    %488 = vmatpush.xpose.msra.mxu0 0.0
    %489 = vmatpush.xpose.msra.mxu0 0.0
    %490 = vmatpush.xpose.msra.mxu0 0.0
    %491 = vmatpush.xpose.msra.mxu0 0.0
    %492 = vmatpush.xpose.msra.mxu0 0.0
    %493 = vmatpush.xpose.msra.mxu0 0.0
    %494 = vmatpush.xpose.msra.mxu0 0.0
    %495 = vmatpush.xpose.msra.mxu0 0.0
    %496 = vmatpush.xpose.msra.mxu0 0.0
    %497 = vmatpush.xpose.msra.mxu0 0.0
    %v498 = vand.u32 %v158, 4294901760
    %499 = vmatpush.xpose.msra.mxu0 %v498
    %v500 = vand.u32 %v481, 4294901760
    %v501 = vsub.f32 %v481, %v500
    %v502 = vand.u32 %v501, 4294901760
    %v503 = vsub.f32 %v501, %v502
    %v504 = vand.u32 %v503, 4294901760
    %505 = vmatmul.f32.gmra.mxu0 %v504
    %v506 = vpop.f32.mrf.mxu0
    %v507 = vadd.f32 0.0, %v506
    %508 = vdwg.mxu0
    %509 = vmatpush.xpose.msra.mxu0 0.0
    %510 = vmatpush.xpose.msra.mxu0 0.0
    %511 = vmatpush.xpose.msra.mxu0 0.0
    %512 = vmatpush.xpose.msra.mxu0 0.0
    %513 = vmatpush.xpose.msra.mxu0 0.0
    %514 = vmatpush.xpose.msra.mxu0 0.0
    %515 = vmatpush.xpose.msra.mxu0 0.0
    %516 = vmatpush.xpose.msra.mxu0 0.0
    %517 = vmatpush.xpose.msra.mxu0 0.0
    %518 = vmatpush.xpose.msra.mxu0 0.0
    %519 = vmatpush.xpose.msra.mxu0 0.0
    %520 = vmatpush.xpose.msra.mxu0 0.0
    %521 = vmatpush.xpose.msra.mxu0 0.0
    %522 = vmatpush.xpose.msra.mxu0 0.0
    %523 = vmatpush.xpose.msra.mxu0 0.0
    %v524 = vand.u32 %v158, 4294901760
    %v525 = vsub.f32 %v158, %v524
    %v526 = vand.u32 %v525, 4294901760
    %v527 = vsub.f32 %v525, %v526
    %v528 = vand.u32 %v527, 4294901760
    %529 = vmatpush.xpose.msra.mxu0 %v528
    %v530 = vand.u32 %v481, 4294901760
    %531 = vmatmul.f32.gmra.mxu0 %v530
    %v532 = vpop.f32.mrf.mxu0
    %v533 = vadd.f32 %v507, %v532
    %534 = vdwg.mxu0
    %535 = vmatpush.xpose.msra.mxu0 0.0
    %536 = vmatpush.xpose.msra.mxu0 0.0
    %537 = vmatpush.xpose.msra.mxu0 0.0
    %538 = vmatpush.xpose.msra.mxu0 0.0
    %539 = vmatpush.xpose.msra.mxu0 0.0
    %540 = vmatpush.xpose.msra.mxu0 0.0
    %541 = vmatpush.xpose.msra.mxu0 0.0
    %542 = vmatpush.xpose.msra.mxu0 0.0
    %543 = vmatpush.xpose.msra.mxu0 0.0
    %544 = vmatpush.xpose.msra.mxu0 0.0
    %545 = vmatpush.xpose.msra.mxu0 0.0
    %546 = vmatpush.xpose.msra.mxu0 0.0
    %547 = vmatpush.xpose.msra.mxu0 0.0
    %548 = vmatpush.xpose.msra.mxu0 0.0
    %549 = vmatpush.xpose.msra.mxu0 0.0
    %v550 = vand.u32 %v158, 4294901760
    %v551 = vsub.f32 %v158, %v550
    %552 = vmatpush.xpose.msra.mxu0 %v551
    %v553 = vand.u32 %v481, 4294901760
    %v554 = vsub.f32 %v481, %v553
    %555 = vmatmul.f32.gmra.mxu0 %v554
    %v556 = vpop.f32.mrf.mxu0
    %v557 = vadd.f32 %v533, %v556
    %558 = vdwg.mxu0
    %559 = vmatpush.xpose.msra.mxu0 0.0
    %560 = vmatpush.xpose.msra.mxu0 0.0
    %561 = vmatpush.xpose.msra.mxu0 0.0
    %562 = vmatpush.xpose.msra.mxu0 0.0
    %563 = vmatpush.xpose.msra.mxu0 0.0
    %564 = vmatpush.xpose.msra.mxu0 0.0
    %565 = vmatpush.xpose.msra.mxu0 0.0
    %566 = vmatpush.xpose.msra.mxu0 0.0
    %567 = vmatpush.xpose.msra.mxu0 0.0
    %568 = vmatpush.xpose.msra.mxu0 0.0
    %569 = vmatpush.xpose.msra.mxu0 0.0
    %570 = vmatpush.xpose.msra.mxu0 0.0
    %571 = vmatpush.xpose.msra.mxu0 0.0
    %572 = vmatpush.xpose.msra.mxu0 0.0
    %573 = vmatpush.xpose.msra.mxu0 0.0
    %v574 = vand.u32 %v158, 4294901760
    %575 = vmatpush.xpose.msra.mxu0 %v574
    %v576 = vand.u32 %v481, 4294901760
    %v577 = vsub.f32 %v481, %v576
    %v578 = vand.u32 %v577, 4294901760
    %579 = vmatmul.f32.gmra.mxu0 %v578
    %v580 = vpop.f32.mrf.mxu0
    %v581 = vadd.f32 %v557, %v580
    %582 = vdwg.mxu0
    %583 = vmatpush.xpose.msra.mxu0 0.0
    %584 = vmatpush.xpose.msra.mxu0 0.0
    %585 = vmatpush.xpose.msra.mxu0 0.0
    %586 = vmatpush.xpose.msra.mxu0 0.0
    %587 = vmatpush.xpose.msra.mxu0 0.0
    %588 = vmatpush.xpose.msra.mxu0 0.0
    %589 = vmatpush.xpose.msra.mxu0 0.0
    %590 = vmatpush.xpose.msra.mxu0 0.0
    %591 = vmatpush.xpose.msra.mxu0 0.0
    %592 = vmatpush.xpose.msra.mxu0 0.0
    %593 = vmatpush.xpose.msra.mxu0 0.0
    %594 = vmatpush.xpose.msra.mxu0 0.0
    %595 = vmatpush.xpose.msra.mxu0 0.0
    %596 = vmatpush.xpose.msra.mxu0 0.0
    %597 = vmatpush.xpose.msra.mxu0 0.0
    %v598 = vand.u32 %v158, 4294901760
    %v599 = vsub.f32 %v158, %v598
    %v600 = vand.u32 %v599, 4294901760
    %601 = vmatpush.xpose.msra.mxu0 %v600
    %v602 = vand.u32 %v481, 4294901760
    %603 = vmatmul.f32.gmra.mxu0 %v602
    %v604 = vpop.f32.mrf.mxu0
    %v605 = vadd.f32 %v581, %v604
    %606 = vdwg.mxu0
    %607 = vmatpush.xpose.msra.mxu0 0.0
    %608 = vmatpush.xpose.msra.mxu0 0.0
    %609 = vmatpush.xpose.msra.mxu0 0.0
    %610 = vmatpush.xpose.msra.mxu0 0.0
    %611 = vmatpush.xpose.msra.mxu0 0.0
    %612 = vmatpush.xpose.msra.mxu0 0.0
    %613 = vmatpush.xpose.msra.mxu0 0.0
    %614 = vmatpush.xpose.msra.mxu0 0.0
    %615 = vmatpush.xpose.msra.mxu0 0.0
    %616 = vmatpush.xpose.msra.mxu0 0.0
    %617 = vmatpush.xpose.msra.mxu0 0.0
    %618 = vmatpush.xpose.msra.mxu0 0.0
    %619 = vmatpush.xpose.msra.mxu0 0.0
    %620 = vmatpush.xpose.msra.mxu0 0.0
    %621 = vmatpush.xpose.msra.mxu0 0.0
    %v622 = vand.u32 %v158, 4294901760
    %623 = vmatpush.xpose.msra.mxu0 %v622
    %v624 = vand.u32 %v481, 4294901760
    %625 = vmatmul.f32.gmra.mxu0 %v624
    %v626 = vpop.f32.mrf.mxu0
    %v627 = vadd.f32 %v605, %v626
    %628 = vdwg.mxu0
    %629 = vmatpush.xpose.msra.mxu0 0.0
    %630 = vmatpush.xpose.msra.mxu0 0.0
    %631 = vmatpush.xpose.msra.mxu0 0.0
    %632 = vmatpush.xpose.msra.mxu0 0.0
    %633 = vmatpush.xpose.msra.mxu0 0.0
    %634 = vmatpush.xpose.msra.mxu0 0.0
    %635 = vmatpush.xpose.msra.mxu0 0.0
    %636 = vmatpush.xpose.msra.mxu0 0.0
    %637 = vmatpush.xpose.msra.mxu0 0.0
    %638 = vmatpush.xpose.msra.mxu0 0.0
    %639 = vmatpush.xpose.msra.mxu0 0.0
    %640 = vmatpush.xpose.msra.mxu0 0.0
    %641 = vmatpush.xpose.msra.mxu0 0.0
    %642 = vmatpush.xpose.msra.mxu0 0.0
    %643 = vmatpush.xpose.msra.mxu0 0.0
    %v644 = vand.u32 %v159, 4294901760
    %645 = vmatpush.xpose.msra.mxu0 %v644
    %v646 = vand.u32 %v482, 4294901760
    %v647 = vsub.f32 %v482, %v646
    %v648 = vand.u32 %v647, 4294901760
    %v649 = vsub.f32 %v647, %v648
    %v650 = vand.u32 %v649, 4294901760
    %651 = vmatmul.f32.gmra.mxu0 %v650
    %v652 = vpop.f32.mrf.mxu0
    %v653 = vadd.f32 %v627, %v652
    %654 = vdwg.mxu0
    %655 = vmatpush.xpose.msra.mxu0 0.0
    %656 = vmatpush.xpose.msra.mxu0 0.0
    %657 = vmatpush.xpose.msra.mxu0 0.0
    %658 = vmatpush.xpose.msra.mxu0 0.0
    %659 = vmatpush.xpose.msra.mxu0 0.0
    %660 = vmatpush.xpose.msra.mxu0 0.0
    %661 = vmatpush.xpose.msra.mxu0 0.0
    %662 = vmatpush.xpose.msra.mxu0 0.0
    %663 = vmatpush.xpose.msra.mxu0 0.0
    %664 = vmatpush.xpose.msra.mxu0 0.0
    %665 = vmatpush.xpose.msra.mxu0 0.0
    %666 = vmatpush.xpose.msra.mxu0 0.0
    %667 = vmatpush.xpose.msra.mxu0 0.0
    %668 = vmatpush.xpose.msra.mxu0 0.0
    %669 = vmatpush.xpose.msra.mxu0 0.0
    %v670 = vand.u32 %v159, 4294901760
    %v671 = vsub.f32 %v159, %v670
    %v672 = vand.u32 %v671, 4294901760
    %v673 = vsub.f32 %v671, %v672
    %v674 = vand.u32 %v673, 4294901760
    %675 = vmatpush.xpose.msra.mxu0 %v674
    %v676 = vand.u32 %v482, 4294901760
    %677 = vmatmul.f32.gmra.mxu0 %v676
    %v678 = vpop.f32.mrf.mxu0
    %v679 = vadd.f32 %v653, %v678
    %680 = vdwg.mxu0
    %681 = vmatpush.xpose.msra.mxu0 0.0
    %682 = vmatpush.xpose.msra.mxu0 0.0
    %683 = vmatpush.xpose.msra.mxu0 0.0
    %684 = vmatpush.xpose.msra.mxu0 0.0
    %685 = vmatpush.xpose.msra.mxu0 0.0
    %686 = vmatpush.xpose.msra.mxu0 0.0
    %687 = vmatpush.xpose.msra.mxu0 0.0
    %688 = vmatpush.xpose.msra.mxu0 0.0
    %689 = vmatpush.xpose.msra.mxu0 0.0
    %690 = vmatpush.xpose.msra.mxu0 0.0
    %691 = vmatpush.xpose.msra.mxu0 0.0
    %692 = vmatpush.xpose.msra.mxu0 0.0
    %693 = vmatpush.xpose.msra.mxu0 0.0
    %694 = vmatpush.xpose.msra.mxu0 0.0
    %695 = vmatpush.xpose.msra.mxu0 0.0
    %v696 = vand.u32 %v159, 4294901760
    %v697 = vsub.f32 %v159, %v696
    %698 = vmatpush.xpose.msra.mxu0 %v697
    %v699 = vand.u32 %v482, 4294901760
    %v700 = vsub.f32 %v482, %v699
    %701 = vmatmul.f32.gmra.mxu0 %v700
    %v702 = vpop.f32.mrf.mxu0
    %v703 = vadd.f32 %v679, %v702
    %704 = vdwg.mxu0
    %705 = vmatpush.xpose.msra.mxu0 0.0
    %706 = vmatpush.xpose.msra.mxu0 0.0
    %707 = vmatpush.xpose.msra.mxu0 0.0
    %708 = vmatpush.xpose.msra.mxu0 0.0
    %709 = vmatpush.xpose.msra.mxu0 0.0
    %710 = vmatpush.xpose.msra.mxu0 0.0
    %711 = vmatpush.xpose.msra.mxu0 0.0
    %712 = vmatpush.xpose.msra.mxu0 0.0
    %713 = vmatpush.xpose.msra.mxu0 0.0
    %714 = vmatpush.xpose.msra.mxu0 0.0
    %715 = vmatpush.xpose.msra.mxu0 0.0
    %716 = vmatpush.xpose.msra.mxu0 0.0
    %717 = vmatpush.xpose.msra.mxu0 0.0
    %718 = vmatpush.xpose.msra.mxu0 0.0
    %719 = vmatpush.xpose.msra.mxu0 0.0
    %v720 = vand.u32 %v159, 4294901760
    %721 = vmatpush.xpose.msra.mxu0 %v720
    %v722 = vand.u32 %v482, 4294901760
    %v723 = vsub.f32 %v482, %v722
    %v724 = vand.u32 %v723, 4294901760
    %725 = vmatmul.f32.gmra.mxu0 %v724
    %v726 = vpop.f32.mrf.mxu0
    %v727 = vadd.f32 %v703, %v726
    %728 = vdwg.mxu0
    %729 = vmatpush.xpose.msra.mxu0 0.0
    %730 = vmatpush.xpose.msra.mxu0 0.0
    %731 = vmatpush.xpose.msra.mxu0 0.0
    %732 = vmatpush.xpose.msra.mxu0 0.0
    %733 = vmatpush.xpose.msra.mxu0 0.0
    %734 = vmatpush.xpose.msra.mxu0 0.0
    %735 = vmatpush.xpose.msra.mxu0 0.0
    %736 = vmatpush.xpose.msra.mxu0 0.0
    %737 = vmatpush.xpose.msra.mxu0 0.0
    %738 = vmatpush.xpose.msra.mxu0 0.0
    %739 = vmatpush.xpose.msra.mxu0 0.0
    %740 = vmatpush.xpose.msra.mxu0 0.0
    %741 = vmatpush.xpose.msra.mxu0 0.0
    %742 = vmatpush.xpose.msra.mxu0 0.0
    %743 = vmatpush.xpose.msra.mxu0 0.0
    %v744 = vand.u32 %v159, 4294901760
    %v745 = vsub.f32 %v159, %v744
    %v746 = vand.u32 %v745, 4294901760
    %747 = vmatpush.xpose.msra.mxu0 %v746
    %v748 = vand.u32 %v482, 4294901760
    %749 = vmatmul.f32.gmra.mxu0 %v748
    %v750 = vpop.f32.mrf.mxu0
    %v751 = vadd.f32 %v727, %v750
    %752 = vdwg.mxu0
    %753 = vmatpush.xpose.msra.mxu0 0.0
    %754 = vmatpush.xpose.msra.mxu0 0.0
    %755 = vmatpush.xpose.msra.mxu0 0.0
    %756 = vmatpush.xpose.msra.mxu0 0.0
    %757 = vmatpush.xpose.msra.mxu0 0.0
    %758 = vmatpush.xpose.msra.mxu0 0.0
    %759 = vmatpush.xpose.msra.mxu0 0.0
    %760 = vmatpush.xpose.msra.mxu0 0.0
    %761 = vmatpush.xpose.msra.mxu0 0.0
    %762 = vmatpush.xpose.msra.mxu0 0.0
    %763 = vmatpush.xpose.msra.mxu0 0.0
    %764 = vmatpush.xpose.msra.mxu0 0.0
    %765 = vmatpush.xpose.msra.mxu0 0.0
    %766 = vmatpush.xpose.msra.mxu0 0.0
    %767 = vmatpush.xpose.msra.mxu0 0.0
    %v768 = vand.u32 %v159, 4294901760
    %769 = vmatpush.xpose.msra.mxu0 %v768
    %v770 = vand.u32 %v482, 4294901760
    %771 = vmatmul.f32.gmra.mxu0 %v770
    %v772 = vpop.f32.mrf.mxu0
    %v773 = vadd.f32 %v751, %v772
    %774 = vdwg.mxu0
    %v775 = vmul.f32 %v773, 0.5
    %v776 = vmul.f32 %v84, %v84
    %vm777 = vcmask 518144
    %v778 = vsel %vm777, %v776, 0.0
    %v779 = vrot.slane %v778, 4
    %v780 = vadd.f32 %v778, %v779
    %v781 = vrot.slane %v780, 2
    %v782 = vadd.f32 %v780, %v781
    %v783 = vrot.slane %v782, 1
    %v784 = vadd.f32 %v782, %v783
    %vm785 = vcmp.gt.f32.partialorder %v784, 0.0
    %v786 = vmul.f32 %v784, -0.5
    %v787 = vmul.f32 %v786, 1.442695
    %v788 = vpow.pop %v787
    %v789 = vmul.f32 %v788, 12.566371
    %v790 = vsel %vm785, %v784, 1.0
    %v791 = vrcp.pop %v790
    %v792 = vmul.f32 %v790, %v791
    %v793 = vsub.f32 1.0, %v792
    %v794 = vmul.f32 %v791, %v793
    %v795 = vadd.f32 %v791, %v794
    %vm796 = vweird.f32 %v790
    %vm797 = vweird.f32 %v791
    %vm798 = vmor %vm796, %vm797
    %v799 = vsel %vm798, %v791, %v795
    %v800 = vand.u32 2147483647, %v790
    %vm801 = vcmp.eq.f32.partialorder %v800, 8.507059e+37
    %v802 = vand.u32 %v790, 2147483648
    %v803 = vor.u32 1.1754944e-38, %v802
    %v804 = vsel %vm801, %v803, %v799
    %v805 = vmul.f32 %v789, %v804
    %v806 = vsel %vm785, %v805, 0.0
    %807 = vxpose.xlu0.b32.start [1/16] %v81, 128
    %808 = vxpose.xlu0.b32.cont [2/16] 0.0, 128
    %809 = vxpose.xlu0.b32.cont [3/16] 0.0, 128
    %810 = vxpose.xlu0.b32.cont [4/16] 0.0, 128
    %811 = vxpose.xlu0.b32.cont [5/16] 0.0, 128
    %812 = vxpose.xlu0.b32.cont [6/16] 0.0, 128
    %813 = vxpose.xlu0.b32.cont [7/16] 0.0, 128
    %814 = vxpose.xlu0.b32.cont [8/16] 0.0, 128
    %815 = vxpose.xlu0.b32.cont [9/16] 0.0, 128
    %816 = vxpose.xlu0.b32.cont [10/16] 0.0, 128
    %817 = vxpose.xlu0.b32.cont [11/16] 0.0, 128
    %818 = vxpose.xlu0.b32.cont [12/16] 0.0, 128
    %819 = vxpose.xlu0.b32.cont [13/16] 0.0, 128
    %820 = vxpose.xlu0.b32.cont [14/16] 0.0, 128
    %821 = vxpose.xlu0.b32.cont [15/16] 0.0, 128
    %822 = vxpose.xlu0.b32.end [16/16] 0.0, 128
    %v823 = vpop.trf.xlu0
    %v824 = vpop.trf.xlu0
    %v825 = vpop.trf.xlu0
    %v826 = vpop.trf.xlu0
    %v827 = vpop.trf.xlu0
    %v828 = vpop.trf.xlu0
    %v829 = vpop.trf.xlu0
    %v830 = vpop.trf.xlu0
    %v831 = vpop.trf.xlu0
    %v832 = vpop.trf.xlu0
    %v833 = vpop.trf.xlu0
    %v834 = vpop.trf.xlu0
    %v835 = vpop.trf.xlu0
    %v836 = vpop.trf.xlu0
    %v837 = vpop.trf.xlu0
    %v838 = vpop.trf.xlu0
    %vm839 = vcmask 23552
    %v841 = vsel %vm839, %v823, 0
    %v844 = vsel %vm86, %v84, 0
    %846 = vmatpush.msra.mxu0 0.0
    %847 = vmatpush.msra.mxu0 0.0
    %848 = vmatpush.msra.mxu0 0.0
    %849 = vmatpush.msra.mxu0 0.0
    %850 = vmatpush.msra.mxu0 0.0
    %851 = vmatpush.msra.mxu0 0.0
    %852 = vmatpush.msra.mxu0 0.0
    %853 = vmatpush.msra.mxu0 0.0
    %854 = vmatpush.msra.mxu0 0.0
    %855 = vmatpush.msra.mxu0 0.0
    %856 = vmatpush.msra.mxu0 0.0
    %857 = vmatpush.msra.mxu0 0.0
    %858 = vmatpush.msra.mxu0 0.0
    %859 = vmatpush.msra.mxu0 0.0
    %860 = vmatpush.msra.mxu0 0.0
    %v861 = vand.u32 %v844, 4294901760
    %862 = vmatpush.msra.mxu0 %v861
    %v863 = vand.u32 %v841, 4294901760
    %v864 = vsub.f32 %v841, %v863
    %v865 = vand.u32 %v864, 4294901760
    %v866 = vsub.f32 %v864, %v865
    %v867 = vand.u32 %v866, 4294901760
    %868 = vmatmul.f32.gmra.mxu0 %v867
    %v869 = vpop.f32.mrf.mxu0
    %v870 = vadd.f32 0.0, %v869
    %871 = vdwg.mxu0
    %872 = vmatpush.msra.mxu0 0.0
    %873 = vmatpush.msra.mxu0 0.0
    %874 = vmatpush.msra.mxu0 0.0
    %875 = vmatpush.msra.mxu0 0.0
    %876 = vmatpush.msra.mxu0 0.0
    %877 = vmatpush.msra.mxu0 0.0
    %878 = vmatpush.msra.mxu0 0.0
    %879 = vmatpush.msra.mxu0 0.0
    %880 = vmatpush.msra.mxu0 0.0
    %881 = vmatpush.msra.mxu0 0.0
    %882 = vmatpush.msra.mxu0 0.0
    %883 = vmatpush.msra.mxu0 0.0
    %884 = vmatpush.msra.mxu0 0.0
    %885 = vmatpush.msra.mxu0 0.0
    %886 = vmatpush.msra.mxu0 0.0
    %v887 = vand.u32 %v844, 4294901760
    %v888 = vsub.f32 %v844, %v887
    %v889 = vand.u32 %v888, 4294901760
    %v890 = vsub.f32 %v888, %v889
    %v891 = vand.u32 %v890, 4294901760
    %892 = vmatpush.msra.mxu0 %v891
    %v893 = vand.u32 %v841, 4294901760
    %894 = vmatmul.f32.gmra.mxu0 %v893
    %v895 = vpop.f32.mrf.mxu0
    %v896 = vadd.f32 %v870, %v895
    %897 = vdwg.mxu0
    %898 = vmatpush.msra.mxu0 0.0
    %899 = vmatpush.msra.mxu0 0.0
    %900 = vmatpush.msra.mxu0 0.0
    %901 = vmatpush.msra.mxu0 0.0
    %902 = vmatpush.msra.mxu0 0.0
    %903 = vmatpush.msra.mxu0 0.0
    %904 = vmatpush.msra.mxu0 0.0
    %905 = vmatpush.msra.mxu0 0.0
    %906 = vmatpush.msra.mxu0 0.0
    %907 = vmatpush.msra.mxu0 0.0
    %908 = vmatpush.msra.mxu0 0.0
    %909 = vmatpush.msra.mxu0 0.0
    %910 = vmatpush.msra.mxu0 0.0
    %911 = vmatpush.msra.mxu0 0.0
    %912 = vmatpush.msra.mxu0 0.0
    %v913 = vand.u32 %v844, 4294901760
    %v914 = vsub.f32 %v844, %v913
    %915 = vmatpush.msra.mxu0 %v914
    %v916 = vand.u32 %v841, 4294901760
    %v917 = vsub.f32 %v841, %v916
    %918 = vmatmul.f32.gmra.mxu0 %v917
    %v919 = vpop.f32.mrf.mxu0
    %v920 = vadd.f32 %v896, %v919
    %921 = vdwg.mxu0
    %922 = vmatpush.msra.mxu0 0.0
    %923 = vmatpush.msra.mxu0 0.0
    %924 = vmatpush.msra.mxu0 0.0
    %925 = vmatpush.msra.mxu0 0.0
    %926 = vmatpush.msra.mxu0 0.0
    %927 = vmatpush.msra.mxu0 0.0
    %928 = vmatpush.msra.mxu0 0.0
    %929 = vmatpush.msra.mxu0 0.0
    %930 = vmatpush.msra.mxu0 0.0
    %931 = vmatpush.msra.mxu0 0.0
    %932 = vmatpush.msra.mxu0 0.0
    %933 = vmatpush.msra.mxu0 0.0
    %934 = vmatpush.msra.mxu0 0.0
    %935 = vmatpush.msra.mxu0 0.0
    %936 = vmatpush.msra.mxu0 0.0
    %v937 = vand.u32 %v844, 4294901760
    %938 = vmatpush.msra.mxu0 %v937
    %v939 = vand.u32 %v841, 4294901760
    %v940 = vsub.f32 %v841, %v939
    %v941 = vand.u32 %v940, 4294901760
    %942 = vmatmul.f32.gmra.mxu0 %v941
    %v943 = vpop.f32.mrf.mxu0
    %v944 = vadd.f32 %v920, %v943
    %945 = vdwg.mxu0
    %946 = vmatpush.msra.mxu0 0.0
    %947 = vmatpush.msra.mxu0 0.0
    %948 = vmatpush.msra.mxu0 0.0
    %949 = vmatpush.msra.mxu0 0.0
    %950 = vmatpush.msra.mxu0 0.0
    %951 = vmatpush.msra.mxu0 0.0
    %952 = vmatpush.msra.mxu0 0.0
    %953 = vmatpush.msra.mxu0 0.0
    %954 = vmatpush.msra.mxu0 0.0
    %955 = vmatpush.msra.mxu0 0.0
    %956 = vmatpush.msra.mxu0 0.0
    %957 = vmatpush.msra.mxu0 0.0
    %958 = vmatpush.msra.mxu0 0.0
    %959 = vmatpush.msra.mxu0 0.0
    %960 = vmatpush.msra.mxu0 0.0
    %v961 = vand.u32 %v844, 4294901760
    %v962 = vsub.f32 %v844, %v961
    %v963 = vand.u32 %v962, 4294901760
    %964 = vmatpush.msra.mxu0 %v963
    %v965 = vand.u32 %v841, 4294901760
    %966 = vmatmul.f32.gmra.mxu0 %v965
    %v967 = vpop.f32.mrf.mxu0
    %v968 = vadd.f32 %v944, %v967
    %969 = vdwg.mxu0
    %970 = vmatpush.msra.mxu0 0.0
    %971 = vmatpush.msra.mxu0 0.0
    %972 = vmatpush.msra.mxu0 0.0
    %973 = vmatpush.msra.mxu0 0.0
    %974 = vmatpush.msra.mxu0 0.0
    %975 = vmatpush.msra.mxu0 0.0
    %976 = vmatpush.msra.mxu0 0.0
    %977 = vmatpush.msra.mxu0 0.0
    %978 = vmatpush.msra.mxu0 0.0
    %979 = vmatpush.msra.mxu0 0.0
    %980 = vmatpush.msra.mxu0 0.0
    %981 = vmatpush.msra.mxu0 0.0
    %982 = vmatpush.msra.mxu0 0.0
    %983 = vmatpush.msra.mxu0 0.0
    %984 = vmatpush.msra.mxu0 0.0
    %v985 = vand.u32 %v844, 4294901760
    %986 = vmatpush.msra.mxu0 %v985
    %v987 = vand.u32 %v841, 4294901760
    %988 = vmatmul.f32.gmra.mxu0 %v987
    %v989 = vpop.f32.mrf.mxu0
    %v990 = vadd.f32 %v968, %v989
    %991 = vdwg.mxu0
    %v992 = vand.u32 2147483647, %v990
    %vm993 = vcmp.le.f32.partialorder %v992, 0.7853982
    %vm994 = vcmp.lt.s32.totalorder %v990, 0
    %v995 = vand.u32 %v990, 2139095040
    %v996 = vshrl.u32 %v995, 23
    %v997 = vsub.s32 %v996, 127
    %v998 = vand.u32 2147483647, %v990
    %v999 = vand.u32 %v998, 8388607
    %v1000 = vor.u32 %v999, 8388608
    %v1001 = vsub.s32 0, %v1000
    %v1002 = vadd.s32 %v997, 1
    %vm1003 = vcmp.gt.s32.totalorder %v1002, 0
    %v1004 = vsel %vm1003, %v1002, 0
    %v1005 = vshrl.u32 %v1004, 5
    %v1006 = vand.u32 %v1004, 31
    %v1007 = vsub.s32 32, %v1006
    %v1008 = vshrl.u32 683565275, %v1007
    %v1009 = vshll.u32 683565275, %v1006
    %v1010 = vshrl.u32 2475754826, %v1007
    %v1011 = vor.u32 %v1009, %v1010
    %v1012 = vshll.u32 2475754826, %v1006
    %v1013 = vshrl.u32 2131351028, %v1007
    %v1014 = vor.u32 %v1012, %v1013
    %v1015 = vshll.u32 2131351028, %v1006
    %v1016 = vshrl.u32 2102212464, %v1007
    %v1017 = vor.u32 %v1015, %v1016
    %v1018 = vshll.u32 2102212464, %v1006
    %v1019 = vshrl.u32 920167782, %v1007
    %v1020 = vor.u32 %v1018, %v1019
    %v1021 = vshll.u32 920167782, %v1006
    %v1022 = vshrl.u32 1326507024, %v1007
    %v1023 = vor.u32 %v1021, %v1022
    %vm1024 = vcmp.lt.s32.totalorder %v1005, 1
    %vm1025 = vcmp.lt.s32.totalorder %v1005, 2
    %vm1026 = vcmp.lt.s32.totalorder %v1005, 3
    %vm1027 = vcmp.lt.s32.totalorder %v1005, 4
    %v1028 = vsel %vm1024, %v1008, %v1011
    %v1029 = vsel %vm1027, %v1017, 2102212464
    %v1030 = vsel %vm1026, %v1014, %v1029
    %v1031 = vsel %vm1025, %v1028, %v1030
    %v1032 = vsel %vm1024, %v1011, %v1014
    %v1033 = vsel %vm1027, %v1020, 920167782
    %v1034 = vsel %vm1026, %v1017, %v1033
    %v1035 = vsel %vm1025, %v1032, %v1034
    %v1036 = vsel %vm1024, %v1014, %v1017
    %v1037 = vsel %vm1027, %v1023, 1326507024
    %v1038 = vsel %vm1026, %v1020, %v1037
    %v1039 = vsel %vm1025, %v1036, %v1038
    %v1040 = vshll.u32 %v1000, 8
    %v1041 = vand.u32 %v1040, 65535
    %v1042 = vshrl.u32 %v1040, 16
    %v1043 = vand.u32 %v1039, 65535
    %v1044 = vshrl.u32 %v1039, 16
    %v1045 = vmul.u32 %v1041, %v1043
    %v1046 = vmul.u32 %v1041, %v1044
    %v1047 = vmul.u32 %v1042, %v1043
    %v1048 = vmul.u32 %v1042, %v1044
    %v1049 = vshll.u32 %v1046, 16
    %v1050 = vshrl.u32 %v1046, 16
    %v1051 = vshll.u32 %v1047, 16
    %v1052 = vshrl.u32 %v1047, 16
    %vm1053 = vc.u32 %v1045, %v1049
    %v1054 = vsel %vm1053, 1, 0
    %v1055 = vadd.s32 %v1045, %v1049
    %v1056 = vadd.s32 %v1048, %v1054
    %vm1057 = vc.u32 %v1055, %v1051
    %v1058 = vsel %vm1057, 1, 0
    %v1059 = vadd.s32 %v1055, %v1051
    %v1060 = vadd.s32 %v1056, %v1058
    %v1061 = vadd.s32 %v1060, %v1050
    %v1062 = vadd.s32 %v1061, %v1052
    %v1063 = vand.u32 %v1040, 65535
    %v1064 = vshrl.u32 %v1040, 16
    %v1065 = vand.u32 %v1035, 65535
    %v1066 = vshrl.u32 %v1035, 16
    %v1067 = vmul.u32 %v1063, %v1065
    %v1068 = vmul.u32 %v1063, %v1066
    %v1069 = vmul.u32 %v1064, %v1065
    %v1070 = vmul.u32 %v1064, %v1066
    %v1071 = vshll.u32 %v1068, 16
    %v1072 = vshrl.u32 %v1068, 16
    %v1073 = vshll.u32 %v1069, 16
    %v1074 = vshrl.u32 %v1069, 16
    %vm1075 = vc.u32 %v1067, %v1071
    %v1076 = vsel %vm1075, 1, 0
    %v1077 = vadd.s32 %v1067, %v1071
    %v1078 = vadd.s32 %v1070, %v1076
    %vm1079 = vc.u32 %v1077, %v1073
    %v1080 = vsel %vm1079, 1, 0
    %v1081 = vadd.s32 %v1077, %v1073
    %v1082 = vadd.s32 %v1078, %v1080
    %v1083 = vadd.s32 %v1082, %v1072
    %v1084 = vadd.s32 %v1083, %v1074
    %v1085 = vmul.u32 %v1040, %v1031
    %v1086 = vadd.s32 %v1062, %v1081
    %vm1087 = vc.u32 %v1062, %v1081
    %v1088 = vadd.s32 %v1084, 1
    %v1089 = vsel %vm1087, %v1088, %v1084
    %v1090 = vadd.s32 %v1085, %v1089
    %v1091 = vadd.s32 %v1090, 536870912
    %v1092 = vshrl.u32 %v1091, 30
    %v1093 = vshll.u32 %v1092, 30
    %v1094 = vsub.s32 %v1090, %v1093
    %vm1095 = vcmp.lt.s32.totalorder %v1094, 0
    %v1096 = vsub.s32 0, %v1094
    %v1097 = vsel %vm1095, %v1096, %v1094
    %v1098 = vclz %v1097
    %v1099 = vsub.s32 %v1098, 2
    %vm1100 = vcmp.gt.s32.totalorder 0, %v1099
    %v1101 = vsel %vm1100, 0, %v1099
    %v1102 = vsub.s32 32, %v1101
    %v1103 = vshll.u32 %v1094, %v1101
    %v1104 = vshrl.u32 %v1086, %v1102
    %v1105 = vor.u32 %v1103, %v1104
    %v1106 = vsub.s32 4294967266, %v1101
    %v1107 = vadd.s32 %v1106, 127
    %v1108 = vshll.u32 %v1107, 23
    %v1109 = vor.u32 4788187, %v1108
    %v1110 = vand.u32 2147483647, %v1109
    %v1112 = vcvt.s32.f32 %v1105
    %v1113 = vmul.f32 %v1112, %v1110
    %v1114 = vxor.u32 %v1113, 2147483648
    %v1115 = vsel %vm994, %v1114, %v1113
    %v1116 = vsub.s32 4, %v1092
    %v1117 = vsel %vm994, %v1116, %v1092
    %v1118 = vsel %vm993, %v990, %v1115
    %v1119 = vsel %vm993, 0, %v1117
    %v1120 = vmul.f32 %v1118, %v1118
    %v1121 = vmul.f32 %v1120, -0.001358992
    %v1122 = vadd.f32 %v1121, 0.041655596
    %v1123 = vmul.f32 %v1120, %v1122
    %v1124 = vadd.f32 %v1123, -0.4999988
    %v1125 = vmul.f32 %v1120, %v1124
    %v1126 = vadd.f32 1.0, %v1125
    %v1127 = vmul.f32 %v1118, %v1118
    %v1128 = vmul.f32 %v1127, -0.00019511016
    %v1129 = vadd.f32 %v1128, 0.008332121
    %v1130 = vmul.f32 %v1127, %v1129
    %v1131 = vadd.f32 %v1130, -0.16666654
    %v1132 = vmul.f32 %v1127, %v1131
    %v1133 = vadd.f32 %v1132, 1.0
    %v1134 = vmul.f32 %v1133, %v1118
    %vm1135 = vweird.f32 %v990
    %v1136 = vand.u32 %v1119, 3
    %vm1137 = vcmp.lt.s32.totalorder %v1136, 2
    %vm1138 = vcmp.eq.s32.totalorder %v1136, 0
    %v1139 = vxor.u32 %v1134, 2147483648
    %v1140 = vsel %vm1138, %v1126, %v1139
    %vm1141 = vcmp.eq.s32.totalorder %v1136, 2
    %v1142 = vxor.u32 %v1126, 2147483648
    %v1143 = vsel %vm1141, %v1142, %v1134
    %v1144 = vsel %vm1137, %v1140, %v1143
    %v1145 = vsel %vm1135, nan, %v1144
    %v1146 = vand.u32 2147483647, %v990
    %vm1147 = vcmp.le.f32.partialorder %v1146, 0.7853982
    %vm1148 = vcmp.lt.s32.totalorder %v990, 0
    %v1149 = vand.u32 %v990, 2139095040
    %v1150 = vshrl.u32 %v1149, 23
    %v1151 = vsub.s32 %v1150, 127
    %v1152 = vand.u32 2147483647, %v990
    %v1153 = vand.u32 %v1152, 8388607
    %v1154 = vor.u32 %v1153, 8388608
    %v1155 = vsub.s32 0, %v1154
    %v1156 = vadd.s32 %v1151, 1
    %vm1157 = vcmp.gt.s32.totalorder %v1156, 0
    %v1158 = vsel %vm1157, %v1156, 0
    %v1159 = vshrl.u32 %v1158, 5
    %v1160 = vand.u32 %v1158, 31
    %v1161 = vsub.s32 32, %v1160
    %v1162 = vshrl.u32 683565275, %v1161
    %v1163 = vshll.u32 683565275, %v1160
    %v1164 = vshrl.u32 2475754826, %v1161
    %v1165 = vor.u32 %v1163, %v1164
    %v1166 = vshll.u32 2475754826, %v1160
    %v1167 = vshrl.u32 2131351028, %v1161
    %v1168 = vor.u32 %v1166, %v1167
    %v1169 = vshll.u32 2131351028, %v1160
    %v1170 = vshrl.u32 2102212464, %v1161
    %v1171 = vor.u32 %v1169, %v1170
    %v1172 = vshll.u32 2102212464, %v1160
    %v1173 = vshrl.u32 920167782, %v1161
    %v1174 = vor.u32 %v1172, %v1173
    %v1175 = vshll.u32 920167782, %v1160
    %v1176 = vshrl.u32 1326507024, %v1161
    %v1177 = vor.u32 %v1175, %v1176
    %vm1178 = vcmp.lt.s32.totalorder %v1159, 1
    %vm1179 = vcmp.lt.s32.totalorder %v1159, 2
    %vm1180 = vcmp.lt.s32.totalorder %v1159, 3
    %vm1181 = vcmp.lt.s32.totalorder %v1159, 4
    %v1182 = vsel %vm1178, %v1162, %v1165
    %v1183 = vsel %vm1181, %v1171, 2102212464
    %v1184 = vsel %vm1180, %v1168, %v1183
    %v1185 = vsel %vm1179, %v1182, %v1184
    %v1186 = vsel %vm1178, %v1165, %v1168
    %v1187 = vsel %vm1181, %v1174, 920167782
    %v1188 = vsel %vm1180, %v1171, %v1187
    %v1189 = vsel %vm1179, %v1186, %v1188
    %v1190 = vsel %vm1178, %v1168, %v1171
    %v1191 = vsel %vm1181, %v1177, 1326507024
    %v1192 = vsel %vm1180, %v1174, %v1191
    %v1193 = vsel %vm1179, %v1190, %v1192
    %v1194 = vshll.u32 %v1154, 8
    %v1195 = vand.u32 %v1194, 65535
    %v1196 = vshrl.u32 %v1194, 16
    %v1197 = vand.u32 %v1193, 65535
    %v1198 = vshrl.u32 %v1193, 16
    %v1199 = vmul.u32 %v1195, %v1197
    %v1200 = vmul.u32 %v1195, %v1198
    %v1201 = vmul.u32 %v1196, %v1197
    %v1202 = vmul.u32 %v1196, %v1198
    %v1203 = vshll.u32 %v1200, 16
    %v1204 = vshrl.u32 %v1200, 16
    %v1205 = vshll.u32 %v1201, 16
    %v1206 = vshrl.u32 %v1201, 16
    %vm1207 = vc.u32 %v1199, %v1203
    %v1208 = vsel %vm1207, 1, 0
    %v1209 = vadd.s32 %v1199, %v1203
    %v1210 = vadd.s32 %v1202, %v1208
    %vm1211 = vc.u32 %v1209, %v1205
    %v1212 = vsel %vm1211, 1, 0
    %v1213 = vadd.s32 %v1209, %v1205
    %v1214 = vadd.s32 %v1210, %v1212
    %v1215 = vadd.s32 %v1214, %v1204
    %v1216 = vadd.s32 %v1215, %v1206
    %v1217 = vand.u32 %v1194, 65535
    %v1218 = vshrl.u32 %v1194, 16
    %v1219 = vand.u32 %v1189, 65535
    %v1220 = vshrl.u32 %v1189, 16
    %v1221 = vmul.u32 %v1217, %v1219
    %v1222 = vmul.u32 %v1217, %v1220
    %v1223 = vmul.u32 %v1218, %v1219
    %v1224 = vmul.u32 %v1218, %v1220
    %v1225 = vshll.u32 %v1222, 16
    %v1226 = vshrl.u32 %v1222, 16
    %v1227 = vshll.u32 %v1223, 16
    %v1228 = vshrl.u32 %v1223, 16
    %vm1229 = vc.u32 %v1221, %v1225
    %v1230 = vsel %vm1229, 1, 0
    %v1231 = vadd.s32 %v1221, %v1225
    %v1232 = vadd.s32 %v1224, %v1230
    %vm1233 = vc.u32 %v1231, %v1227
    %v1234 = vsel %vm1233, 1, 0
    %v1235 = vadd.s32 %v1231, %v1227
    %v1236 = vadd.s32 %v1232, %v1234
    %v1237 = vadd.s32 %v1236, %v1226
    %v1238 = vadd.s32 %v1237, %v1228
    %v1239 = vmul.u32 %v1194, %v1185
    %v1240 = vadd.s32 %v1216, %v1235
    %vm1241 = vc.u32 %v1216, %v1235
    %v1242 = vadd.s32 %v1238, 1
    %v1243 = vsel %vm1241, %v1242, %v1238
    %v1244 = vadd.s32 %v1239, %v1243
    %v1245 = vadd.s32 %v1244, 536870912
    %v1246 = vshrl.u32 %v1245, 30
    %v1247 = vshll.u32 %v1246, 30
    %v1248 = vsub.s32 %v1244, %v1247
    %vm1249 = vcmp.lt.s32.totalorder %v1248, 0
    %v1250 = vsub.s32 0, %v1248
    %v1251 = vsel %vm1249, %v1250, %v1248
    %v1252 = vclz %v1251
    %v1253 = vsub.s32 %v1252, 2
    %vm1254 = vcmp.gt.s32.totalorder 0, %v1253
    %v1255 = vsel %vm1254, 0, %v1253
    %v1256 = vsub.s32 32, %v1255
    %v1257 = vshll.u32 %v1248, %v1255
    %v1258 = vshrl.u32 %v1240, %v1256
    %v1259 = vor.u32 %v1257, %v1258
    %v1260 = vsub.s32 4294967266, %v1255
    %v1261 = vadd.s32 %v1260, 127
    %v1262 = vshll.u32 %v1261, 23
    %v1263 = vor.u32 4788187, %v1262
    %v1264 = vand.u32 2147483647, %v1263
    %v1266 = vcvt.s32.f32 %v1259
    %v1267 = vmul.f32 %v1266, %v1264
    %v1268 = vxor.u32 %v1267, 2147483648
    %v1269 = vsel %vm1148, %v1268, %v1267
    %v1270 = vsub.s32 4, %v1246
    %v1271 = vsel %vm1148, %v1270, %v1246
    %v1272 = vsel %vm1147, %v990, %v1269
    %v1273 = vsel %vm1147, 0, %v1271
    %v1274 = vmul.f32 %v1272, %v1272
    %v1275 = vmul.f32 %v1274, -0.001358992
    %v1276 = vadd.f32 %v1275, 0.041655596
    %v1277 = vmul.f32 %v1274, %v1276
    %v1278 = vadd.f32 %v1277, -0.4999988
    %v1279 = vmul.f32 %v1274, %v1278
    %v1280 = vadd.f32 1.0, %v1279
    %v1281 = vmul.f32 %v1272, %v1272
    %v1282 = vmul.f32 %v1281, -0.00019511016
    %v1283 = vadd.f32 %v1282, 0.008332121
    %v1284 = vmul.f32 %v1281, %v1283
    %v1285 = vadd.f32 %v1284, -0.16666654
    %v1286 = vmul.f32 %v1281, %v1285
    %v1287 = vadd.f32 %v1286, 1.0
    %v1288 = vmul.f32 %v1287, %v1272
    %vm1289 = vweird.f32 %v990
    %v1290 = vadd.s32 %v1273, 3
    %v1291 = vand.u32 %v1290, 3
    %vm1292 = vcmp.lt.s32.totalorder %v1291, 2
    %vm1293 = vcmp.eq.s32.totalorder %v1291, 0
    %v1294 = vxor.u32 %v1288, 2147483648
    %v1295 = vsel %vm1293, %v1280, %v1294
    %vm1296 = vcmp.eq.s32.totalorder %v1291, 2
    %v1297 = vxor.u32 %v1280, 2147483648
    %v1298 = vsel %vm1296, %v1297, %v1288
    %v1299 = vsel %vm1292, %v1295, %v1298
    %v1300 = vsel %vm1289, nan, %v1299
    %1301 = vxpose.xlu0.b32.start [1/16] %v80, 128
    %1302 = vxpose.xlu0.b32.cont [2/16] 0.0, 128
    %1303 = vxpose.xlu0.b32.cont [3/16] 0.0, 128
    %1304 = vxpose.xlu0.b32.cont [4/16] 0.0, 128
    %1305 = vxpose.xlu0.b32.cont [5/16] 0.0, 128
    %1306 = vxpose.xlu0.b32.cont [6/16] 0.0, 128
    %1307 = vxpose.xlu0.b32.cont [7/16] 0.0, 128
    %1308 = vxpose.xlu0.b32.cont [8/16] 0.0, 128
    %1309 = vxpose.xlu0.b32.cont [9/16] 0.0, 128
    %1310 = vxpose.xlu0.b32.cont [10/16] 0.0, 128
    %1311 = vxpose.xlu0.b32.cont [11/16] 0.0, 128
    %1312 = vxpose.xlu0.b32.cont [12/16] 0.0, 128
    %1313 = vxpose.xlu0.b32.cont [13/16] 0.0, 128
    %1314 = vxpose.xlu0.b32.cont [14/16] 0.0, 128
    %1315 = vxpose.xlu0.b32.cont [15/16] 0.0, 128
    %1316 = vxpose.xlu0.b32.end [16/16] 0.0, 128
    %v1317 = vpop.trf.xlu0
    %v1318 = vpop.trf.xlu0
    %v1319 = vpop.trf.xlu0
    %v1320 = vpop.trf.xlu0
    %v1321 = vpop.trf.xlu0
    %v1322 = vpop.trf.xlu0
    %v1323 = vpop.trf.xlu0
    %v1324 = vpop.trf.xlu0
    %v1325 = vpop.trf.xlu0
    %v1326 = vpop.trf.xlu0
    %v1327 = vpop.trf.xlu0
    %v1328 = vpop.trf.xlu0
    %v1329 = vpop.trf.xlu0
    %v1330 = vpop.trf.xlu0
    %v1331 = vpop.trf.xlu0
    %v1332 = vpop.trf.xlu0
    %v1334 = vsel %vm839, %v1317, 0
    %1336 = vmatpush.msra.mxu0 0.0
    %1337 = vmatpush.msra.mxu0 0.0
    %1338 = vmatpush.msra.mxu0 0.0
    %1339 = vmatpush.msra.mxu0 0.0
    %1340 = vmatpush.msra.mxu0 0.0
    %1341 = vmatpush.msra.mxu0 0.0
    %1342 = vmatpush.msra.mxu0 0.0
    %1343 = vmatpush.msra.mxu0 0.0
    %1344 = vmatpush.msra.mxu0 0.0
    %1345 = vmatpush.msra.mxu0 0.0
    %1346 = vmatpush.msra.mxu0 0.0
    %1347 = vmatpush.msra.mxu0 0.0
    %1348 = vmatpush.msra.mxu0 0.0
    %1349 = vmatpush.msra.mxu0 0.0
    %1350 = vmatpush.msra.mxu0 0.0
    %v1351 = vand.u32 %v844, 4294901760
    %1352 = vmatpush.msra.mxu0 %v1351
    %v1353 = vand.u32 %v1334, 4294901760
    %v1354 = vsub.f32 %v1334, %v1353
    %v1355 = vand.u32 %v1354, 4294901760
    %v1356 = vsub.f32 %v1354, %v1355
    %v1357 = vand.u32 %v1356, 4294901760
    %1358 = vmatmul.f32.gmra.mxu0 %v1357
    %v1359 = vpop.f32.mrf.mxu0
    %v1360 = vadd.f32 0.0, %v1359
    %1361 = vdwg.mxu0
    %1362 = vmatpush.msra.mxu0 0.0
    %1363 = vmatpush.msra.mxu0 0.0
    %1364 = vmatpush.msra.mxu0 0.0
    %1365 = vmatpush.msra.mxu0 0.0
    %1366 = vmatpush.msra.mxu0 0.0
    %1367 = vmatpush.msra.mxu0 0.0
    %1368 = vmatpush.msra.mxu0 0.0
    %1369 = vmatpush.msra.mxu0 0.0
    %1370 = vmatpush.msra.mxu0 0.0
    %1371 = vmatpush.msra.mxu0 0.0
    %1372 = vmatpush.msra.mxu0 0.0
    %1373 = vmatpush.msra.mxu0 0.0
    %1374 = vmatpush.msra.mxu0 0.0
    %1375 = vmatpush.msra.mxu0 0.0
    %1376 = vmatpush.msra.mxu0 0.0
    %v1377 = vand.u32 %v844, 4294901760
    %v1378 = vsub.f32 %v844, %v1377
    %v1379 = vand.u32 %v1378, 4294901760
    %v1380 = vsub.f32 %v1378, %v1379
    %v1381 = vand.u32 %v1380, 4294901760
    %1382 = vmatpush.msra.mxu0 %v1381
    %v1383 = vand.u32 %v1334, 4294901760
    %1384 = vmatmul.f32.gmra.mxu0 %v1383
    %v1385 = vpop.f32.mrf.mxu0
    %v1386 = vadd.f32 %v1360, %v1385
    %1387 = vdwg.mxu0
    %1388 = vmatpush.msra.mxu0 0.0
    %1389 = vmatpush.msra.mxu0 0.0
    %1390 = vmatpush.msra.mxu0 0.0
    %1391 = vmatpush.msra.mxu0 0.0
    %1392 = vmatpush.msra.mxu0 0.0
    %1393 = vmatpush.msra.mxu0 0.0
    %1394 = vmatpush.msra.mxu0 0.0
    %1395 = vmatpush.msra.mxu0 0.0
    %1396 = vmatpush.msra.mxu0 0.0
    %1397 = vmatpush.msra.mxu0 0.0
    %1398 = vmatpush.msra.mxu0 0.0
    %1399 = vmatpush.msra.mxu0 0.0
    %1400 = vmatpush.msra.mxu0 0.0
    %1401 = vmatpush.msra.mxu0 0.0
    %1402 = vmatpush.msra.mxu0 0.0
    %v1403 = vand.u32 %v844, 4294901760
    %v1404 = vsub.f32 %v844, %v1403
    %1405 = vmatpush.msra.mxu0 %v1404
    %v1406 = vand.u32 %v1334, 4294901760
    %v1407 = vsub.f32 %v1334, %v1406
    %1408 = vmatmul.f32.gmra.mxu0 %v1407
    %v1409 = vpop.f32.mrf.mxu0
    %v1410 = vadd.f32 %v1386, %v1409
    %1411 = vdwg.mxu0
    %1412 = vmatpush.msra.mxu0 0.0
    %1413 = vmatpush.msra.mxu0 0.0
    %1414 = vmatpush.msra.mxu0 0.0
    %1415 = vmatpush.msra.mxu0 0.0
    %1416 = vmatpush.msra.mxu0 0.0
    %1417 = vmatpush.msra.mxu0 0.0
    %1418 = vmatpush.msra.mxu0 0.0
    %1419 = vmatpush.msra.mxu0 0.0
    %1420 = vmatpush.msra.mxu0 0.0
    %1421 = vmatpush.msra.mxu0 0.0
    %1422 = vmatpush.msra.mxu0 0.0
    %1423 = vmatpush.msra.mxu0 0.0
    %1424 = vmatpush.msra.mxu0 0.0
    %1425 = vmatpush.msra.mxu0 0.0
    %1426 = vmatpush.msra.mxu0 0.0
    %v1427 = vand.u32 %v844, 4294901760
    %1428 = vmatpush.msra.mxu0 %v1427
    %v1429 = vand.u32 %v1334, 4294901760
    %v1430 = vsub.f32 %v1334, %v1429
    %v1431 = vand.u32 %v1430, 4294901760
    %1432 = vmatmul.f32.gmra.mxu0 %v1431
    %v1433 = vpop.f32.mrf.mxu0
    %v1434 = vadd.f32 %v1410, %v1433
    %1435 = vdwg.mxu0
    %1436 = vmatpush.msra.mxu0 0.0
    %1437 = vmatpush.msra.mxu0 0.0
    %1438 = vmatpush.msra.mxu0 0.0
    %1439 = vmatpush.msra.mxu0 0.0
    %1440 = vmatpush.msra.mxu0 0.0
    %1441 = vmatpush.msra.mxu0 0.0
    %1442 = vmatpush.msra.mxu0 0.0
    %1443 = vmatpush.msra.mxu0 0.0
    %1444 = vmatpush.msra.mxu0 0.0
    %1445 = vmatpush.msra.mxu0 0.0
    %1446 = vmatpush.msra.mxu0 0.0
    %1447 = vmatpush.msra.mxu0 0.0
    %1448 = vmatpush.msra.mxu0 0.0
    %1449 = vmatpush.msra.mxu0 0.0
    %1450 = vmatpush.msra.mxu0 0.0
    %v1451 = vand.u32 %v844, 4294901760
    %v1452 = vsub.f32 %v844, %v1451
    %v1453 = vand.u32 %v1452, 4294901760
    %1454 = vmatpush.msra.mxu0 %v1453
    %v1455 = vand.u32 %v1334, 4294901760
    %1456 = vmatmul.f32.gmra.mxu0 %v1455
    %v1457 = vpop.f32.mrf.mxu0
    %v1458 = vadd.f32 %v1434, %v1457
    %1459 = vdwg.mxu0
    %1460 = vmatpush.msra.mxu0 0.0
    %1461 = vmatpush.msra.mxu0 0.0
    %1462 = vmatpush.msra.mxu0 0.0
    %1463 = vmatpush.msra.mxu0 0.0
    %1464 = vmatpush.msra.mxu0 0.0
    %1465 = vmatpush.msra.mxu0 0.0
    %1466 = vmatpush.msra.mxu0 0.0
    %1467 = vmatpush.msra.mxu0 0.0
    %1468 = vmatpush.msra.mxu0 0.0
    %1469 = vmatpush.msra.mxu0 0.0
    %1470 = vmatpush.msra.mxu0 0.0
    %1471 = vmatpush.msra.mxu0 0.0
    %1472 = vmatpush.msra.mxu0 0.0
    %1473 = vmatpush.msra.mxu0 0.0
    %1474 = vmatpush.msra.mxu0 0.0
    %v1475 = vand.u32 %v844, 4294901760
    %1476 = vmatpush.msra.mxu0 %v1475
    %v1477 = vand.u32 %v1334, 4294901760
    %1478 = vmatmul.f32.gmra.mxu0 %v1477
    %v1479 = vpop.f32.mrf.mxu0
    %v1480 = vadd.f32 %v1458, %v1479
    %1481 = vdwg.mxu0
    %v1482 = vmul.f32 %v1145, %v1480
    %vm1483 = vcmask 523264
    %v1484 = vsel %vm1483, %v1482, 0.0
    %v1485 = vrot.slane %v1484, 4
    %v1486 = vadd.f32 %v1484, %v1485
    %v1487 = vrot.slane %v1486, 2
    %v1488 = vadd.f32 %v1486, %v1487
    %v1489 = vrot.slane %v1488, 1
    %v1490 = vadd.f32 %v1488, %v1489
    %v1491 = vmul.f32 %v1490, %v806
    %v1492 = vmul.f32 %v1300, %v1480
    %v1493 = vsel %vm1483, %v1492, 0.0
    %v1494 = vrot.slane %v1493, 4
    %v1495 = vadd.f32 %v1493, %v1494
    %v1496 = vrot.slane %v1495, 2
    %v1497 = vadd.f32 %v1495, %v1496
    %v1498 = vrot.slane %v1497, 1
    %v1499 = vadd.f32 %v1497, %v1498
    %v1500 = vmul.f32 %v1499, %v806
    %v1501 = vmul.f32 %v1491, %v1145
    %v1502 = vmul.f32 %v1500, %v1300
    %v1503 = vadd.f32 %v1501, %v1502
    %v1504 = vsel %vm1483, %v84, 0
    %v1507 = vsel %vm1483, %v1503, 0
    %1509 = vmatpush.xpose.msra.mxu0 0.0
    %1510 = vmatpush.xpose.msra.mxu0 0.0
    %1511 = vmatpush.xpose.msra.mxu0 0.0
    %1512 = vmatpush.xpose.msra.mxu0 0.0
    %1513 = vmatpush.xpose.msra.mxu0 0.0
    %1514 = vmatpush.xpose.msra.mxu0 0.0
    %1515 = vmatpush.xpose.msra.mxu0 0.0
    %1516 = vmatpush.xpose.msra.mxu0 0.0
    %1517 = vmatpush.xpose.msra.mxu0 0.0
    %1518 = vmatpush.xpose.msra.mxu0 0.0
    %1519 = vmatpush.xpose.msra.mxu0 0.0
    %1520 = vmatpush.xpose.msra.mxu0 0.0
    %1521 = vmatpush.xpose.msra.mxu0 0.0
    %1522 = vmatpush.xpose.msra.mxu0 0.0
    %1523 = vmatpush.xpose.msra.mxu0 0.0
    %v1524 = vand.u32 %v1507, 4294901760
    %1525 = vmatpush.xpose.msra.mxu0 %v1524
    %v1526 = vand.u32 %v1504, 4294901760
    %v1527 = vsub.f32 %v1504, %v1526
    %v1528 = vand.u32 %v1527, 4294901760
    %v1529 = vsub.f32 %v1527, %v1528
    %v1530 = vand.u32 %v1529, 4294901760
    %1531 = vmatmul.f32.gmra.mxu0 %v1530
    %v1532 = vpop.f32.mrf.mxu0
    %v1533 = vadd.f32 0.0, %v1532
    %1534 = vdwg.mxu0
    %1535 = vmatpush.xpose.msra.mxu0 0.0
    %1536 = vmatpush.xpose.msra.mxu0 0.0
    %1537 = vmatpush.xpose.msra.mxu0 0.0
    %1538 = vmatpush.xpose.msra.mxu0 0.0
    %1539 = vmatpush.xpose.msra.mxu0 0.0
    %1540 = vmatpush.xpose.msra.mxu0 0.0
    %1541 = vmatpush.xpose.msra.mxu0 0.0
    %1542 = vmatpush.xpose.msra.mxu0 0.0
    %1543 = vmatpush.xpose.msra.mxu0 0.0
    %1544 = vmatpush.xpose.msra.mxu0 0.0
    %1545 = vmatpush.xpose.msra.mxu0 0.0
    %1546 = vmatpush.xpose.msra.mxu0 0.0
    %1547 = vmatpush.xpose.msra.mxu0 0.0
    %1548 = vmatpush.xpose.msra.mxu0 0.0
    %1549 = vmatpush.xpose.msra.mxu0 0.0
    %v1550 = vand.u32 %v1507, 4294901760
    %v1551 = vsub.f32 %v1507, %v1550
    %v1552 = vand.u32 %v1551, 4294901760
    %v1553 = vsub.f32 %v1551, %v1552
    %v1554 = vand.u32 %v1553, 4294901760
    %1555 = vmatpush.xpose.msra.mxu0 %v1554
    %v1556 = vand.u32 %v1504, 4294901760
    %1557 = vmatmul.f32.gmra.mxu0 %v1556
    %v1558 = vpop.f32.mrf.mxu0
    %v1559 = vadd.f32 %v1533, %v1558
    %1560 = vdwg.mxu0
    %1561 = vmatpush.xpose.msra.mxu0 0.0
    %1562 = vmatpush.xpose.msra.mxu0 0.0
    %1563 = vmatpush.xpose.msra.mxu0 0.0
    %1564 = vmatpush.xpose.msra.mxu0 0.0
    %1565 = vmatpush.xpose.msra.mxu0 0.0
    %1566 = vmatpush.xpose.msra.mxu0 0.0
    %1567 = vmatpush.xpose.msra.mxu0 0.0
    %1568 = vmatpush.xpose.msra.mxu0 0.0
    %1569 = vmatpush.xpose.msra.mxu0 0.0
    %1570 = vmatpush.xpose.msra.mxu0 0.0
    %1571 = vmatpush.xpose.msra.mxu0 0.0
    %1572 = vmatpush.xpose.msra.mxu0 0.0
    %1573 = vmatpush.xpose.msra.mxu0 0.0
    %1574 = vmatpush.xpose.msra.mxu0 0.0
    %1575 = vmatpush.xpose.msra.mxu0 0.0
    %v1576 = vand.u32 %v1507, 4294901760
    %v1577 = vsub.f32 %v1507, %v1576
    %1578 = vmatpush.xpose.msra.mxu0 %v1577
    %v1579 = vand.u32 %v1504, 4294901760
    %v1580 = vsub.f32 %v1504, %v1579
    %1581 = vmatmul.f32.gmra.mxu0 %v1580
    %v1582 = vpop.f32.mrf.mxu0
    %v1583 = vadd.f32 %v1559, %v1582
    %1584 = vdwg.mxu0
    %1585 = vmatpush.xpose.msra.mxu0 0.0
    %1586 = vmatpush.xpose.msra.mxu0 0.0
    %1587 = vmatpush.xpose.msra.mxu0 0.0
    %1588 = vmatpush.xpose.msra.mxu0 0.0
    %1589 = vmatpush.xpose.msra.mxu0 0.0
    %1590 = vmatpush.xpose.msra.mxu0 0.0
    %1591 = vmatpush.xpose.msra.mxu0 0.0
    %1592 = vmatpush.xpose.msra.mxu0 0.0
    %1593 = vmatpush.xpose.msra.mxu0 0.0
    %1594 = vmatpush.xpose.msra.mxu0 0.0
    %1595 = vmatpush.xpose.msra.mxu0 0.0
    %1596 = vmatpush.xpose.msra.mxu0 0.0
    %1597 = vmatpush.xpose.msra.mxu0 0.0
    %1598 = vmatpush.xpose.msra.mxu0 0.0
    %1599 = vmatpush.xpose.msra.mxu0 0.0
    %v1600 = vand.u32 %v1507, 4294901760
    %1601 = vmatpush.xpose.msra.mxu0 %v1600
    %v1602 = vand.u32 %v1504, 4294901760
    %v1603 = vsub.f32 %v1504, %v1602
    %v1604 = vand.u32 %v1603, 4294901760
    %1605 = vmatmul.f32.gmra.mxu0 %v1604
    %v1606 = vpop.f32.mrf.mxu0
    %v1607 = vadd.f32 %v1583, %v1606
    %1608 = vdwg.mxu0
    %1609 = vmatpush.xpose.msra.mxu0 0.0
    %1610 = vmatpush.xpose.msra.mxu0 0.0
    %1611 = vmatpush.xpose.msra.mxu0 0.0
    %1612 = vmatpush.xpose.msra.mxu0 0.0
    %1613 = vmatpush.xpose.msra.mxu0 0.0
    %1614 = vmatpush.xpose.msra.mxu0 0.0
    %1615 = vmatpush.xpose.msra.mxu0 0.0
    %1616 = vmatpush.xpose.msra.mxu0 0.0
    %1617 = vmatpush.xpose.msra.mxu0 0.0
    %1618 = vmatpush.xpose.msra.mxu0 0.0
    %1619 = vmatpush.xpose.msra.mxu0 0.0
    %1620 = vmatpush.xpose.msra.mxu0 0.0
    %1621 = vmatpush.xpose.msra.mxu0 0.0
    %1622 = vmatpush.xpose.msra.mxu0 0.0
    %1623 = vmatpush.xpose.msra.mxu0 0.0
    %v1624 = vand.u32 %v1507, 4294901760
    %v1625 = vsub.f32 %v1507, %v1624
    %v1626 = vand.u32 %v1625, 4294901760
    %1627 = vmatpush.xpose.msra.mxu0 %v1626
    %v1628 = vand.u32 %v1504, 4294901760
    %1629 = vmatmul.f32.gmra.mxu0 %v1628
    %v1630 = vpop.f32.mrf.mxu0
    %v1631 = vadd.f32 %v1607, %v1630
    %1632 = vdwg.mxu0
    %1633 = vmatpush.xpose.msra.mxu0 0.0
    %1634 = vmatpush.xpose.msra.mxu0 0.0
    %1635 = vmatpush.xpose.msra.mxu0 0.0
    %1636 = vmatpush.xpose.msra.mxu0 0.0
    %1637 = vmatpush.xpose.msra.mxu0 0.0
    %1638 = vmatpush.xpose.msra.mxu0 0.0
    %1639 = vmatpush.xpose.msra.mxu0 0.0
    %1640 = vmatpush.xpose.msra.mxu0 0.0
    %1641 = vmatpush.xpose.msra.mxu0 0.0
    %1642 = vmatpush.xpose.msra.mxu0 0.0
    %1643 = vmatpush.xpose.msra.mxu0 0.0
    %1644 = vmatpush.xpose.msra.mxu0 0.0
    %1645 = vmatpush.xpose.msra.mxu0 0.0
    %1646 = vmatpush.xpose.msra.mxu0 0.0
    %1647 = vmatpush.xpose.msra.mxu0 0.0
    %v1648 = vand.u32 %v1507, 4294901760
    %1649 = vmatpush.xpose.msra.mxu0 %v1648
    %v1650 = vand.u32 %v1504, 4294901760
    %1651 = vmatmul.f32.gmra.mxu0 %v1650
    %v1652 = vpop.f32.mrf.mxu0
    %v1653 = vadd.f32 %v1631, %v1652
    %1654 = vdwg.mxu0
    %s1655 = sld [smem:[#allocation2]]
    %v1656 = vstv %s1655
    %v1657 = vmul.f32 %v1653, %v1656
    %v1658 = vmul.f32 %v80, 0.53192306
    %v1659 = vsub.f32 %v1657, %v1658
    %vm1660 = vcmask 59392
    %v1661 = vsel %vm1660, %v80, 0.0
    %1662 = vadd.xlane.f32.xlu0 %v1661
    %v1663 = vpop.xlane.xlu0 %1662
    %s1664 = smul.f32 %s1655, 4.1887903
    %v1665 = vstv %s1664
    %v1666 = vmul.f32 %v1665, %v1663
    %v1667 = vadd.f32 %v1659, %v1666
    %v1668 = vmul.f32 %v1667, 0.5
    %v1669 = vadd.f32 %v775, %v1668
    %1670 = vst.msk [vmem:[#allocation11] sm:$0x7] %vm1660, %v1669
    // Predicated region
    $region42: #{tpu_custom_call.1} parent=1 // pred_check
      _
    $region43: #{tpu_custom_call.1} parent=1 // pred_check_branch
      %1672 = sbr.rel (0) target = $region45
    $region44: #{tpu_custom_call.1} parent=1 // pred_region
      %1674 = vsyncadd [#allocation5], 0
      %s1676 = sshll.u32 [#allocation11], 4
      %s1677 = int_to_ptr.vmem [resolvable:$true] %s1676
      %s1678 = sshll.u32 %s6, 4
      %s1679 = int_to_ptr.hbm [resolvable:$true] %s1678
      %1681 = dma.vmem_to_hbm [thread:$0]  %s1677, 64, %s1679, [#allocation5]
    $region45: #{tpu_custom_call.1} parent=1 // pred_fallthru
      _
    // Predicated region
    $region46: #{tpu_custom_call.1} parent=1 // pred_check
      _
    $region47: #{tpu_custom_call.1} parent=1 // pred_check_branch
      %1683 = sbr.rel (0) target = $region49
    $region48: #{tpu_custom_call.1} parent=1 // pred_region
      %1685 = dma.done [#allocation5], 64
    $region49: #{tpu_custom_call.1} parent=1 // pred_fallthru
      _
    %1686 = vsyncpa [#allocation4], 1
    %1687 = vsyncpa [#allocation7], 1
    %1688 = vsyncpa [#allocation10], 1
    %1689 = vsyncpa [#allocation5], 1

</llo_original>
